<compile_context>
chip_gen: v5e
topology: v5e:2x2
jax: 0.10.0
libtpu: 0.0.40
codegen_flags: <defaults>
</compile_context>

<pallas_src>
import math
import jax
import jax.numpy as jnp
from jax.experimental import pallas as pl
from jax.experimental.pallas import tpu as pltpu

_LANE = 128
_SUBLANE = 8


def _round_up(n, m):
    return -(-n // m) * m


def _pick_batch_tile(batch, *, max_tile=1024, min_grid_steps=1):
    """Largest batch tile (capped at max_tile, multiple of 8) that still yields
    >= min_grid_steps grid steps.  Default min_grid_steps=1 is best for
    single-TensorCore chips (v5e/v6e); use min_grid_steps=4 on v7x so both
    TensorCores get >= 2 software-pipelined steps each."""
    bp = _round_up(batch, _SUBLANE)
    tile = min(max_tile, bp)
    while (min_grid_steps > 1 and -(-bp // tile) < min_grid_steps
           and tile > _SUBLANE):
        tile = max(_SUBLANE, _round_up(tile // 2, _SUBLANE))
    return tile


# ----------------------------------------------------------------------------
# Kernel
# ----------------------------------------------------------------------------
def discriminator_kernel(x_ref,
                         w1_ref, b1_ref,
                         w2_ref, b2_ref,
                         w3_ref, b3_ref,
                         w4_ref, b4_ref,
                         w5_ref, b5_ref,
                         o_ref):
    """Fused 5-layer MLP for one batch tile.

    bf16 operands on the MXU, f32 accumulation + f32 bias, bf16 re-cast between
    layers, final layer stored in o_ref's dtype.
    """
    compute_dtype = x_ref.dtype  # bfloat16

    def dense(h, w_ref, b_ref):
        y = jnp.dot(h, w_ref[...], preferred_element_type=jnp.float32)
        return y + b_ref[...]  # [1, out] bias broadcasts over the batch tile

    h = dense(x_ref[...], w1_ref, b1_ref).astype(compute_dtype)
    h = dense(h, w2_ref, b2_ref).astype(compute_dtype)
    h = dense(h, w3_ref, b3_ref).astype(compute_dtype)
    h = dense(h, w4_ref, b4_ref).astype(compute_dtype)
    y = dense(h, w5_ref, b5_ref)  # final layer stays f32
    o_ref[...] = y.astype(o_ref.dtype)


# ----------------------------------------------------------------------------
# One-time parameter preprocessing (hoisted out of the forward pass)
# ----------------------------------------------------------------------------
def prepare_discriminator_params(params):
    """Cast weights to bf16 / biases to f32 once, and zero-pad ONLY the final
    layer's output dim to a multiple of 128 lanes (exact: padded columns of W5
    and padded bias entries are zero, so padded output lanes are garbage-free
    and simply sliced off).  Returns (prepped_params, out_dim)."""
    prepped = []
    n_layers = len(params)
    out_dim = params[-1][0].shape[-1]
    for li, (w, b) in enumerate(params):
        wb = w.astype(jnp.bfloat16)
        bb = b.reshape(1, -1).astype(jnp.float32)
        if li == n_layers - 1:
            fo = wb.shape[1]
            fo_p = _round_up(fo, _LANE)
            if fo_p != fo:
                wb = jnp.zeros((wb.shape[0], fo_p), jnp.bfloat16).at[:, :fo].set(wb)
                bb = jnp.zeros((1, fo_p), jnp.float32).at[:, :fo].set(bb)
        prepped.append((wb, bb))
    return prepped, out_dim


# ----------------------------------------------------------------------------
# Forward wrapper
# ----------------------------------------------------------------------------
def discriminator_forward(x, prepped_params, out_dim, *,
                          batch_tile=None, min_grid_steps=1,
                          out_dtype=jnp.float32):
    """x: [B, in_dim] (any float dtype); prepped_params from
    prepare_discriminator_params().  Returns [B, out_dim] in out_dtype.
    out_dtype=jnp.bfloat16 halves the output HBM stream if f32 logits are not
    required."""
    B, in_dim = x.shape
    assert prepped_params[0][0].shape[0] == in_dim, (
        prepped_params[0][0].shape, in_dim)
    out_pad = prepped_params[-1][0].shape[1]

    # Resident-weight VMEM budget guard.
    weight_bytes = sum(int(w.size) * 2 + int(b.size) * 4
                       for w, b in prepped_params)
    # TODO(synk): for large num_units (weights > ~24 MiB) switch W4/W5 to a
    # K-reduction grid axis ('arbitrary') with an f32 VMEM accumulator instead
    # of whole-array VMEM residency (v7x only has 64 MiB physical VMEM).
    assert weight_bytes < 24 * 1024 * 1024, weight_bytes

    # ---- batch tiling: big tiles, pad B up to a multiple of the tile --------
    if batch_tile is None:
        batch_tile = _pick_batch_tile(B, min_grid_steps=min_grid_steps)
    Bp = _round_up(B, batch_tile)
    grid = (Bp // batch_tile,)

    xb = x.astype(jnp.bfloat16)
    if Bp != B:
        xb = jnp.zeros((Bp, in_dim), jnp.bfloat16).at[:B].set(xb)

    # ---- specs: x / out batch-tiled; weights & biases VMEM-resident ---------
    # x block last dim == full array dim (in_dim), so no lane padding needed.
    in_specs = [pl.BlockSpec((batch_tile, in_dim), lambda i: (i, 0))]
    flat_args = [xb]
    weight_spec = pl.BlockSpec(memory_space=pltpu.MemorySpace.VMEM)
    for (w, b) in prepped_params:
        flat_args.extend([w, b])
        in_specs.extend([weight_spec, weight_spec])
    out_specs = pl.BlockSpec((batch_tile, out_pad), lambda i: (i, 0))

    # ---- advisory cost estimate ---------------------------------------------
    flops = 2 * Bp * sum(int(w.shape[0]) * int(w.shape[1])
                         for w, _ in prepped_params)
    bytes_accessed = (int(xb.size) * 2 + weight_bytes
                      + Bp * out_pad * jnp.dtype(out_dtype).itemsize)
    cost = pl.CostEstimate(flops=int(flops), transcendentals=0,
                           bytes_accessed=int(bytes_accessed))

    out_padded = pl.pallas_call(
        discriminator_kernel,
        out_shape=jax.ShapeDtypeStruct((Bp, out_pad), out_dtype),
        grid=grid,
        in_specs=in_specs,
        out_specs=out_specs,
        compiler_params=pltpu.CompilerParams(
            dimension_semantics=("parallel",)),
        cost_estimate=cost,
    )(*flat_args)

    return out_padded[:B, :out_dim]


# ----------------------------------------------------------------------------
# Param init (mimics PyTorch nn.Linear default init) + reference
# ----------------------------------------------------------------------------
def init_linear(key, fan_in, fan_out):
    kw, kb = jax.random.split(key)
    bound = 1.0 / math.sqrt(fan_in)
    w = jax.random.uniform(kw, (fan_in, fan_out), jnp.float32, -bound, bound)
    b = jax.random.uniform(kb, (1, fan_out), jnp.float32, -bound, bound)
    return w, b


def make_discriminator_params(key, in_dim, out_dim, num_units):
    dims = [in_dim,
            num_units * 1, num_units * 2, num_units * 4, num_units * 8,
            out_dim]
    keys = jax.random.split(key, len(dims) - 1)
    return [init_linear(k, dims[i], dims[i + 1]) for i, k in enumerate(keys)]


def discriminator_reference(x, params):
    """Pure-JAX reference with the same numerics as the kernel
    (bf16 operands, f32 accumulation, f32 bias)."""
    h = x.astype(jnp.bfloat16)
    y = None
    for w, b in params:
        y = jnp.dot(h, w.astype(jnp.bfloat16),
                    preferred_element_type=jnp.float32) + b.astype(jnp.float32)
        h = y.astype(jnp.bfloat16)
    return y


if __name__ == "__main__":
    key = jax.random.PRNGKey(0)
    k_x, k_p = jax.random.split(key)

    # Small widths consistent with the module.
    B, in_dim, out_dim, num_units = 512, 32, 8, 32
    x = jax.random.normal(k_x, (B, in_dim), jnp.float32)
    params = make_discriminator_params(k_p, in_dim, out_dim, num_units)

    # One-time preprocessing (outside the forward / jit launch path).
    prepped_params, real_out_dim = prepare_discriminator_params(params)

    out = discriminator_forward(x, prepped_params, real_out_dim)
    out = jax.block_until_ready(out)

    ref = discriminator_reference(x, params)
    assert out.shape == (B, out_dim), out.shape
    assert out.dtype == jnp.float32
    assert jnp.allclose(out, ref, atol=2e-2, rtol=2e-2), float(
        jnp.max(jnp.abs(out - ref)))

    print("KERNEL_OK")
</pallas_src>

<mosaic_0001>
module attributes {stable_mosaic.version = 11 : i64} {
  func.func @discriminator_kernel(%arg0: i32, %arg1: memref<512x32xbf16, #tpu.memory_space<vmem>>, %arg2: memref<32x32xbf16, #tpu.memory_space<vmem>>, %arg3: memref<1x32xf32, #tpu.memory_space<vmem>>, %arg4: memref<32x64xbf16, #tpu.memory_space<vmem>>, %arg5: memref<1x64xf32, #tpu.memory_space<vmem>>, %arg6: memref<64x128xbf16, #tpu.memory_space<vmem>>, %arg7: memref<1x128xf32, #tpu.memory_space<vmem>>, %arg8: memref<128x256xbf16, #tpu.memory_space<vmem>>, %arg9: memref<1x256xf32, #tpu.memory_space<vmem>>, %arg10: memref<256x128xbf16, #tpu.memory_space<vmem>>, %arg11: memref<1x128xf32, #tpu.memory_space<vmem>>, %arg12: memref<512x128xf32, #tpu.memory_space<vmem>>) attributes {dimension_semantics = [#tpu.dimension_semantics<parallel>], iteration_bounds = array<i64: 1>, scalar_prefetch = 0 : i64, scratch_operands = 0 : i64, tpu.core_type = #tpu.core_type<tc>, window_params = [{transform_indices = @transform_0, window_bounds = array<i64: 512, 32>}, {pipeline_mode = #tpu.pipeline_mode<synchronous>, transform_indices = @transform_1, window_bounds = array<i64: 32, 32>}, {pipeline_mode = #tpu.pipeline_mode<synchronous>, transform_indices = @transform_2, window_bounds = array<i64: 1, 32>}, {pipeline_mode = #tpu.pipeline_mode<synchronous>, transform_indices = @transform_3, window_bounds = array<i64: 32, 64>}, {pipeline_mode = #tpu.pipeline_mode<synchronous>, transform_indices = @transform_4, window_bounds = array<i64: 1, 64>}, {pipeline_mode = #tpu.pipeline_mode<synchronous>, transform_indices = @transform_5, window_bounds = array<i64: 64, 128>}, {pipeline_mode = #tpu.pipeline_mode<synchronous>, transform_indices = @transform_6, window_bounds = array<i64: 1, 128>}, {pipeline_mode = #tpu.pipeline_mode<synchronous>, transform_indices = @transform_7, window_bounds = array<i64: 128, 256>}, {pipeline_mode = #tpu.pipeline_mode<synchronous>, transform_indices = @transform_8, window_bounds = array<i64: 1, 256>}, {pipeline_mode = #tpu.pipeline_mode<synchronous>, transform_indices = @transform_9, window_bounds = array<i64: 256, 128>}, {pipeline_mode = #tpu.pipeline_mode<synchronous>, transform_indices = @transform_10, window_bounds = array<i64: 1, 128>}, {transform_indices = @transform_11, window_bounds = array<i64: 512, 128>}]} {
    %c0 = arith.constant 0 : index
    %c0_0 = arith.constant 0 : index
    %0 = vector.load %arg1[%c0, %c0_0] : memref<512x32xbf16, #tpu.memory_space<vmem>>, vector<512x32xbf16>
    %c0_1 = arith.constant 0 : index
    %c0_2 = arith.constant 0 : index
    %1 = vector.load %arg2[%c0_1, %c0_2] : memref<32x32xbf16, #tpu.memory_space<vmem>>, vector<32x32xbf16>
    %cst = arith.constant dense<0.000000e+00> : vector<512x32xf32>
    %2 = tpu.matmul %0, %1, %cst {dimension_numbers = #tpu.dot_dimension_numbers<[1], [0], [0], [1], [0, 0, 1, 1], [], []>} : vector<512x32xbf16>, vector<32x32xbf16>, vector<512x32xf32> -> vector<512x32xf32>
    %c0_3 = arith.constant 0 : index
    %c0_4 = arith.constant 0 : index
    %3 = vector.load %arg3[%c0_3, %c0_4] : memref<1x32xf32, #tpu.memory_space<vmem>>, vector<1x32xf32>
    %4 = vector.broadcast %3 : vector<1x32xf32> to vector<512x32xf32>
    %5 = arith.addf %2, %4 : vector<512x32xf32>
    %6 = arith.truncf %5 : vector<512x32xf32> to vector<512x32xbf16>
    %c0_5 = arith.constant 0 : index
    %c0_6 = arith.constant 0 : index
    %7 = vector.load %arg4[%c0_5, %c0_6] : memref<32x64xbf16, #tpu.memory_space<vmem>>, vector<32x64xbf16>
    %cst_7 = arith.constant dense<0.000000e+00> : vector<512x64xf32>
    %8 = tpu.matmul %6, %7, %cst_7 {dimension_numbers = #tpu.dot_dimension_numbers<[1], [0], [0], [1], [0, 0, 1, 1], [], []>} : vector<512x32xbf16>, vector<32x64xbf16>, vector<512x64xf32> -> vector<512x64xf32>
    %c0_8 = arith.constant 0 : index
    %c0_9 = arith.constant 0 : index
    %9 = vector.load %arg5[%c0_8, %c0_9] : memref<1x64xf32, #tpu.memory_space<vmem>>, vector<1x64xf32>
    %10 = vector.broadcast %9 : vector<1x64xf32> to vector<512x64xf32>
    %11 = arith.addf %8, %10 : vector<512x64xf32>
    %12 = arith.truncf %11 : vector<512x64xf32> to vector<512x64xbf16>
    %c0_10 = arith.constant 0 : index
    %c0_11 = arith.constant 0 : index
    %13 = vector.load %arg6[%c0_10, %c0_11] : memref<64x128xbf16, #tpu.memory_space<vmem>>, vector<64x128xbf16>
    %cst_12 = arith.constant dense<0.000000e+00> : vector<512x128xf32>
    %14 = tpu.matmul %12, %13, %cst_12 {dimension_numbers = #tpu.dot_dimension_numbers<[1], [0], [0], [1], [0, 0, 1, 1], [], []>} : vector<512x64xbf16>, vector<64x128xbf16>, vector<512x128xf32> -> vector<512x128xf32>
    %c0_13 = arith.constant 0 : index
    %c0_14 = arith.constant 0 : index
    %15 = vector.load %arg7[%c0_13, %c0_14] : memref<1x128xf32, #tpu.memory_space<vmem>>, vector<1x128xf32>
    %16 = vector.broadcast %15 : vector<1x128xf32> to vector<512x128xf32>
    %17 = arith.addf %14, %16 : vector<512x128xf32>
    %18 = arith.truncf %17 : vector<512x128xf32> to vector<512x128xbf16>
    %c0_15 = arith.constant 0 : index
    %c0_16 = arith.constant 0 : index
    %19 = vector.load %arg8[%c0_15, %c0_16] : memref<128x256xbf16, #tpu.memory_space<vmem>>, vector<128x256xbf16>
    %cst_17 = arith.constant dense<0.000000e+00> : vector<512x256xf32>
    %20 = tpu.matmul %18, %19, %cst_17 {dimension_numbers = #tpu.dot_dimension_numbers<[1], [0], [0], [1], [0, 0, 1, 1], [], []>} : vector<512x128xbf16>, vector<128x256xbf16>, vector<512x256xf32> -> vector<512x256xf32>
    %c0_18 = arith.constant 0 : index
    %c0_19 = arith.constant 0 : index
    %21 = vector.load %arg9[%c0_18, %c0_19] : memref<1x256xf32, #tpu.memory_space<vmem>>, vector<1x256xf32>
    %22 = vector.broadcast %21 : vector<1x256xf32> to vector<512x256xf32>
    %23 = arith.addf %20, %22 : vector<512x256xf32>
    %24 = arith.truncf %23 : vector<512x256xf32> to vector<512x256xbf16>
    %c0_20 = arith.constant 0 : index
    %c0_21 = arith.constant 0 : index
    %25 = vector.load %arg10[%c0_20, %c0_21] : memref<256x128xbf16, #tpu.memory_space<vmem>>, vector<256x128xbf16>
    %cst_22 = arith.constant dense<0.000000e+00> : vector<512x128xf32>
    %26 = tpu.matmul %24, %25, %cst_22 {dimension_numbers = #tpu.dot_dimension_numbers<[1], [0], [0], [1], [0, 0, 1, 1], [], []>} : vector<512x256xbf16>, vector<256x128xbf16>, vector<512x128xf32> -> vector<512x128xf32>
    %c0_23 = arith.constant 0 : index
    %c0_24 = arith.constant 0 : index
    %27 = vector.load %arg11[%c0_23, %c0_24] : memref<1x128xf32, #tpu.memory_space<vmem>>, vector<1x128xf32>
    %28 = vector.broadcast %27 : vector<1x128xf32> to vector<512x128xf32>
    %29 = arith.addf %26, %28 : vector<512x128xf32>
    %c0_25 = arith.constant 0 : index
    %c0_26 = arith.constant 0 : index
    %30 = vector.load %arg12[%c0_25, %c0_26] : memref<512x128xf32, #tpu.memory_space<vmem>>, vector<512x128xf32>
    tpu.vector_store %arg12[%c0_25, %c0_26], %29 {strides = array<i32>} : memref<512x128xf32, #tpu.memory_space<vmem>>, vector<512x128xf32>,
    return
  }
  func.func @transform_0(%arg0: i32) -> (i32, i32) {
    %c0_i32 = arith.constant 0 : i32
    %c0_i32_0 = arith.constant 0 : i32
    return %arg0, %c0_i32 : i32, i32
  }
  func.func @transform_1(%arg0: i32) -> (i32, i32) {
    %c0_i32 = arith.constant 0 : i32
    %c0_i32_0 = arith.constant 0 : i32
    %c0_i32_1 = arith.constant 0 : i32
    return %c0_i32, %c0_i32_0 : i32, i32
  }
  func.func @transform_2(%arg0: i32) -> (i32, i32) {
    %c0_i32 = arith.constant 0 : i32
    %c0_i32_0 = arith.constant 0 : i32
    %c0_i32_1 = arith.constant 0 : i32
    return %c0_i32, %c0_i32_0 : i32, i32
  }
  func.func @transform_3(%arg0: i32) -> (i32, i32) {
    %c0_i32 = arith.constant 0 : i32
    %c0_i32_0 = arith.constant 0 : i32
    %c0_i32_1 = arith.constant 0 : i32
    return %c0_i32, %c0_i32_0 : i32, i32
  }
  func.func @transform_4(%arg0: i32) -> (i32, i32) {
    %c0_i32 = arith.constant 0 : i32
    %c0_i32_0 = arith.constant 0 : i32
    %c0_i32_1 = arith.constant 0 : i32
    return %c0_i32, %c0_i32_0 : i32, i32
  }
  func.func @transform_5(%arg0: i32) -> (i32, i32) {
    %c0_i32 = arith.constant 0 : i32
    %c0_i32_0 = arith.constant 0 : i32
    %c0_i32_1 = arith.constant 0 : i32
    return %c0_i32, %c0_i32_0 : i32, i32
  }
  func.func @transform_6(%arg0: i32) -> (i32, i32) {
    %c0_i32 = arith.constant 0 : i32
    %c0_i32_0 = arith.constant 0 : i32
    %c0_i32_1 = arith.constant 0 : i32
    return %c0_i32, %c0_i32_0 : i32, i32
  }
  func.func @transform_7(%arg0: i32) -> (i32, i32) {
    %c0_i32 = arith.constant 0 : i32
    %c0_i32_0 = arith.constant 0 : i32
    %c0_i32_1 = arith.constant 0 : i32
    return %c0_i32, %c0_i32_0 : i32, i32
  }
  func.func @transform_8(%arg0: i32) -> (i32, i32) {
    %c0_i32 = arith.constant 0 : i32
    %c0_i32_0 = arith.constant 0 : i32
    %c0_i32_1 = arith.constant 0 : i32
    return %c0_i32, %c0_i32_0 : i32, i32
  }
  func.func @transform_9(%arg0: i32) -> (i32, i32) {
    %c0_i32 = arith.constant 0 : i32
    %c0_i32_0 = arith.constant 0 : i32
    %c0_i32_1 = arith.constant 0 : i32
    return %c0_i32, %c0_i32_0 : i32, i32
  }
  func.func @transform_10(%arg0: i32) -> (i32, i32) {
    %c0_i32 = arith.constant 0 : i32
    %c0_i32_0 = arith.constant 0 : i32
    %c0_i32_1 = arith.constant 0 : i32
    return %c0_i32, %c0_i32_0 : i32, i32
  }
  func.func @transform_11(%arg0: i32) -> (i32, i32) {
    %c0_i32 = arith.constant 0 : i32
    %c0_i32_0 = arith.constant 0 : i32
    return %arg0, %c0_i32 : i32, i32
  }
}

</mosaic_0001>

<llo_original>
// kernel: tpu_custom_call.1
$region0: #{tpu_custom_call.1}
  #allocation0 [shape = 'u32[]', space=smem, size = 0x4, offset = 0x4, fixed_abs, tag = 'smem constant byte address 0x4 - core index']
  #allocation1 [shape = 'u32[72,128]{1,0:T(1,128)}', space=vmem, size = 0x9000, scoped, tag = 'internal scratch']
  %s0 = inlined_call_operand.vmem [shape: bf16[512,32], index: 0, kind: input, shape index: {}]
  %s1 = inlined_call_operand.vmem [shape: bf16[32,32], index: 1, kind: input, shape index: {}]
  %s2 = inlined_call_operand.hbm [shape: f32[1,32], index: 2, kind: input, shape index: {}]
  %s3 = inlined_call_operand.vmem [shape: bf16[32,64], index: 3, kind: input, shape index: {}]
  %s4 = inlined_call_operand.vmem [shape: f32[1,64], index: 4, kind: input, shape index: {}]
  %s5 = inlined_call_operand.vmem [shape: bf16[64,128], index: 5, kind: input, shape index: {}]
  %s6 = inlined_call_operand.hbm [shape: f32[1,128], index: 6, kind: input, shape index: {}]
  %s7 = inlined_call_operand.vmem [shape: bf16[128,256], index: 7, kind: input, shape index: {}]
  %s8 = inlined_call_operand.vmem [shape: f32[1,256], index: 8, kind: input, shape index: {}]
  %s9 = inlined_call_operand.vmem [shape: bf16[256,128], index: 9, kind: input, shape index: {}]
  %s10 = inlined_call_operand.vmem [shape: f32[1,128], index: 10, kind: input, shape index: {}]
  %s11 = inlined_call_operand.hbm [shape: f32[512,128], index: 11, kind: output, shape index: {}]
  %s12 = sld [smem:[#allocation0]]
  $region62: #{tpu_custom_call.1} parent=0
    _
  %s14 = ssub.s32 1, %s12
  %s15 = scalar_select 0, %s14, %s12
  $region1: #{tpu_custom_call.1} parent=0
    #allocation2 [shape = 'u8[512]{0}', space=vmem, size = 0x400, scoped, tag = 'input window, operand 2, single buffered']
    #allocation3 [shape = 's32[1]{0}', space=sflag, size = 0x4, scoped, tag = 'scoped memory for tpu_custom_call.1']
    #allocation4 [shape = 's32[1]{0}', space=sflag, size = 0x4, scoped, tag = 'scoped memory for tpu_custom_call.1']
    #allocation5 [shape = 'u8[512]{0}', space=vmem, size = 0x400, scoped, tag = 'input window, operand 6, single buffered']
    #allocation6 [shape = 's32[1]{0}', space=sflag, size = 0x4, scoped, tag = 'scoped memory for tpu_custom_call.1']
    #allocation7 [shape = 'u8[262144]{0}', space=vmem, size = 0x40000, scoped, tag = 'output window, operand 0, single buffered']
    %16 = vsyncpa [#allocation3], 0
    %17 = vsyncpa [#allocation6], 0
    %18 = vsyncpa [#allocation4], 0
    // Predicated region
    $region2: #{tpu_custom_call.1} parent=1 // pred_check
      _
    $region3: #{tpu_custom_call.1} parent=1 // pred_check_branch
      %20 = sbr.rel (0) target = $region5
    $region4: #{tpu_custom_call.1} parent=1 // pred_region
      _
    $region5: #{tpu_custom_call.1} parent=1 // pred_fallthru
      _
    // Predicated region
    $region6: #{tpu_custom_call.1} parent=1 // pred_check
      _
    $region7: #{tpu_custom_call.1} parent=1 // pred_check_branch
      %22 = sbr.rel (0) target = $region9
    $region8: #{tpu_custom_call.1} parent=1 // pred_region
      _
    $region9: #{tpu_custom_call.1} parent=1 // pred_fallthru
      _
    // Predicated region
    $region10: #{tpu_custom_call.1} parent=1 // pred_check
      _
    $region11: #{tpu_custom_call.1} parent=1 // pred_check_branch
      %24 = sbr.rel (0) target = $region13
    $region12: #{tpu_custom_call.1} parent=1 // pred_region
      %26 = vsyncadd [#allocation3], 0
      %s28 = sshll.u32 %s2, 4
      %s29 = int_to_ptr.hbm [resolvable:$true] %s28
      %s30 = sshll.u32 [#allocation2], 4
      %s31 = int_to_ptr.vmem [resolvable:$true] %s30
      %33 = dma.hbm_to_vmem [thread:$0]  %s29, 16, %s31, [#allocation3]
    $region13: #{tpu_custom_call.1} parent=1 // pred_fallthru
      _
    // Predicated region
    $region14: #{tpu_custom_call.1} parent=1 // pred_check
      _
    $region15: #{tpu_custom_call.1} parent=1 // pred_check_branch
      %35 = sbr.rel (0) target = $region17
    $region16: #{tpu_custom_call.1} parent=1 // pred_region
      _
    $region17: #{tpu_custom_call.1} parent=1 // pred_fallthru
      _
    // Predicated region
    $region18: #{tpu_custom_call.1} parent=1 // pred_check
      _
    $region19: #{tpu_custom_call.1} parent=1 // pred_check_branch
      %37 = sbr.rel (0) target = $region21
    $region20: #{tpu_custom_call.1} parent=1 // pred_region
      _
    $region21: #{tpu_custom_call.1} parent=1 // pred_fallthru
      _
    // Predicated region
    $region22: #{tpu_custom_call.1} parent=1 // pred_check
      _
    $region23: #{tpu_custom_call.1} parent=1 // pred_check_branch
      %39 = sbr.rel (0) target = $region25
    $region24: #{tpu_custom_call.1} parent=1 // pred_region
      _
    $region25: #{tpu_custom_call.1} parent=1 // pred_fallthru
      _
    // Predicated region
    $region26: #{tpu_custom_call.1} parent=1 // pred_check
      _
    $region27: #{tpu_custom_call.1} parent=1 // pred_check_branch
      %41 = sbr.rel (0) target = $region29
    $region28: #{tpu_custom_call.1} parent=1 // pred_region
      %43 = vsyncadd [#allocation6], 0
      %s45 = sshll.u32 %s6, 4
      %s46 = int_to_ptr.hbm [resolvable:$true] %s45
      %s47 = sshll.u32 [#allocation5], 4
      %s48 = int_to_ptr.vmem [resolvable:$true] %s47
      %50 = dma.hbm_to_vmem [thread:$0]  %s46, 16, %s48, [#allocation6]
    $region29: #{tpu_custom_call.1} parent=1 // pred_fallthru
      _
    // Predicated region
    $region30: #{tpu_custom_call.1} parent=1 // pred_check
      _
    $region31: #{tpu_custom_call.1} parent=1 // pred_check_branch
      %52 = sbr.rel (0) target = $region33
    $region32: #{tpu_custom_call.1} parent=1 // pred_region
      _
    $region33: #{tpu_custom_call.1} parent=1 // pred_fallthru
      _
    // Predicated region
    $region34: #{tpu_custom_call.1} parent=1 // pred_check
      _
    $region35: #{tpu_custom_call.1} parent=1 // pred_check_branch
      %54 = sbr.rel (0) target = $region37
    $region36: #{tpu_custom_call.1} parent=1 // pred_region
      _
    $region37: #{tpu_custom_call.1} parent=1 // pred_fallthru
      _
    // Predicated region
    $region38: #{tpu_custom_call.1} parent=1 // pred_check
      _
    $region39: #{tpu_custom_call.1} parent=1 // pred_check_branch
      %56 = sbr.rel (0) target = $region41
    $region40: #{tpu_custom_call.1} parent=1 // pred_region
      _
    $region41: #{tpu_custom_call.1} parent=1 // pred_fallthru
      _
    // Predicated region
    $region42: #{tpu_custom_call.1} parent=1 // pred_check
      _
    $region43: #{tpu_custom_call.1} parent=1 // pred_check_branch
      %58 = sbr.rel (0) target = $region45
    $region44: #{tpu_custom_call.1} parent=1 // pred_region
      _
    $region45: #{tpu_custom_call.1} parent=1 // pred_fallthru
      _
    // Predicated region
    $region46: #{tpu_custom_call.1} parent=1 // pred_check
      _
    $region47: #{tpu_custom_call.1} parent=1 // pred_check_branch
      %60 = sbr.rel (0) target = $region49
    $region48: #{tpu_custom_call.1} parent=1 // pred_region
      %62 = dma.done [#allocation3], 16
    $region49: #{tpu_custom_call.1} parent=1 // pred_fallthru
      _
    // Predicated region
    $region50: #{tpu_custom_call.1} parent=1 // pred_check
      _
    $region51: #{tpu_custom_call.1} parent=1 // pred_check_branch
      %64 = sbr.rel (0) target = $region53
    $region52: #{tpu_custom_call.1} parent=1 // pred_region
      %66 = dma.done [#allocation6], 16
    $region53: #{tpu_custom_call.1} parent=1 // pred_fallthru
      _
    %v68 = vld [vmem:[%s0] sm:$0xf]
    %v69 = vld [vmem:[%s0 + $0x4] sm:$0xf]
    %v70 = vld [vmem:[%s0 + $0x8] sm:$0xf]
    %v71 = vld [vmem:[%s0 + $0xc] sm:$0xf]
    %v72 = vld [vmem:[%s0 + $0x10] sm:$0xf]
    %v73 = vld [vmem:[%s0 + $0x14] sm:$0xf]
    %v74 = vld [vmem:[%s0 + $0x18] sm:$0xf]
    %v75 = vld [vmem:[%s0 + $0x1c] sm:$0xf]
    %v76 = vld [vmem:[%s0 + $0x20] sm:$0xf]
    %v77 = vld [vmem:[%s0 + $0x24] sm:$0xf]
    %v78 = vld [vmem:[%s0 + $0x28] sm:$0xf]
    %v79 = vld [vmem:[%s0 + $0x2c] sm:$0xf]
    %v80 = vld [vmem:[%s0 + $0x30] sm:$0xf]
    %v81 = vld [vmem:[%s0 + $0x34] sm:$0xf]
    %v82 = vld [vmem:[%s0 + $0x38] sm:$0xf]
    %v83 = vld [vmem:[%s0 + $0x3c] sm:$0xf]
    %v84 = vld [vmem:[%s0 + $0x40] sm:$0xf]
    %v85 = vld [vmem:[%s0 + $0x44] sm:$0xf]
    %v86 = vld [vmem:[%s0 + $0x48] sm:$0xf]
    %v87 = vld [vmem:[%s0 + $0x4c] sm:$0xf]
    %v88 = vld [vmem:[%s0 + $0x50] sm:$0xf]
    %v89 = vld [vmem:[%s0 + $0x54] sm:$0xf]
    %v90 = vld [vmem:[%s0 + $0x58] sm:$0xf]
    %v91 = vld [vmem:[%s0 + $0x5c] sm:$0xf]
    %v92 = vld [vmem:[%s0 + $0x60] sm:$0xf]
    %v93 = vld [vmem:[%s0 + $0x64] sm:$0xf]
    %v94 = vld [vmem:[%s0 + $0x68] sm:$0xf]
    %v95 = vld [vmem:[%s0 + $0x6c] sm:$0xf]
    %v96 = vld [vmem:[%s0 + $0x70] sm:$0xf]
    %v97 = vld [vmem:[%s0 + $0x74] sm:$0xf]
    %v98 = vld [vmem:[%s0 + $0x78] sm:$0xf]
    %v99 = vld [vmem:[%s0 + $0x7c] sm:$0xf]
    %v100 = vld [vmem:[%s0 + $0x80] sm:$0xf]
    %v101 = vld [vmem:[%s0 + $0x84] sm:$0xf]
    %v102 = vld [vmem:[%s0 + $0x88] sm:$0xf]
    %v103 = vld [vmem:[%s0 + $0x8c] sm:$0xf]
    %v104 = vld [vmem:[%s0 + $0x90] sm:$0xf]
    %v105 = vld [vmem:[%s0 + $0x94] sm:$0xf]
    %v106 = vld [vmem:[%s0 + $0x98] sm:$0xf]
    %v107 = vld [vmem:[%s0 + $0x9c] sm:$0xf]
    %v108 = vld [vmem:[%s0 + $0xa0] sm:$0xf]
    %v109 = vld [vmem:[%s0 + $0xa4] sm:$0xf]
    %v110 = vld [vmem:[%s0 + $0xa8] sm:$0xf]
    %v111 = vld [vmem:[%s0 + $0xac] sm:$0xf]
    %v112 = vld [vmem:[%s0 + $0xb0] sm:$0xf]
    %v113 = vld [vmem:[%s0 + $0xb4] sm:$0xf]
    %v114 = vld [vmem:[%s0 + $0xb8] sm:$0xf]
    %v115 = vld [vmem:[%s0 + $0xbc] sm:$0xf]
    %v116 = vld [vmem:[%s0 + $0xc0] sm:$0xf]
    %v117 = vld [vmem:[%s0 + $0xc4] sm:$0xf]
    %v118 = vld [vmem:[%s0 + $0xc8] sm:$0xf]
    %v119 = vld [vmem:[%s0 + $0xcc] sm:$0xf]
    %v120 = vld [vmem:[%s0 + $0xd0] sm:$0xf]
    %v121 = vld [vmem:[%s0 + $0xd4] sm:$0xf]
    %v122 = vld [vmem:[%s0 + $0xd8] sm:$0xf]
    %v123 = vld [vmem:[%s0 + $0xdc] sm:$0xf]
    %v124 = vld [vmem:[%s0 + $0xe0] sm:$0xf]
    %v125 = vld [vmem:[%s0 + $0xe4] sm:$0xf]
    %v126 = vld [vmem:[%s0 + $0xe8] sm:$0xf]
    %v127 = vld [vmem:[%s0 + $0xec] sm:$0xf]
    %v128 = vld [vmem:[%s0 + $0xf0] sm:$0xf]
    %v129 = vld [vmem:[%s0 + $0xf4] sm:$0xf]
    %v130 = vld [vmem:[%s0 + $0xf8] sm:$0xf]
    %v131 = vld [vmem:[%s0 + $0xfc] sm:$0xf]
    %v132 = vld [vmem:[%s1] sm:$0xf]
    %v133 = vld [vmem:[%s1 + $0x4] sm:$0xf]
    %v134 = vld [vmem:[%s1 + $0x8] sm:$0xf]
    %v135 = vld [vmem:[%s1 + $0xc] sm:$0xf]
    %v136 = vld [vmem:[#allocation2] sm:$0x1]
    %v138 = vperm.slane %v136, 0
    %v204 = vunpack.c.l.b16 %v68
    %v205 = vunpack.c.l.b16 %v69
    %v206 = vunpack.c.l.b16 %v70
    %v207 = vunpack.c.l.b16 %v71
    %v208 = vunpack.c.l.b16 %v72
    %v209 = vunpack.c.l.b16 %v73
    %v210 = vunpack.c.l.b16 %v74
    %v211 = vunpack.c.l.b16 %v75
    %v212 = vunpack.c.l.b16 %v76
    %v213 = vunpack.c.l.b16 %v77
    %v214 = vunpack.c.l.b16 %v78
    %v215 = vunpack.c.l.b16 %v79
    %v216 = vunpack.c.l.b16 %v80
    %v217 = vunpack.c.l.b16 %v81
    %v218 = vunpack.c.l.b16 %v82
    %v219 = vunpack.c.l.b16 %v83
    %v220 = vunpack.c.l.b16 %v84
    %v221 = vunpack.c.l.b16 %v85
    %v222 = vunpack.c.l.b16 %v86
    %v223 = vunpack.c.l.b16 %v87
    %v224 = vunpack.c.l.b16 %v88
    %v225 = vunpack.c.l.b16 %v89
    %v226 = vunpack.c.l.b16 %v90
    %v227 = vunpack.c.l.b16 %v91
    %v228 = vunpack.c.l.b16 %v92
    %v229 = vunpack.c.l.b16 %v93
    %v230 = vunpack.c.l.b16 %v94
    %v231 = vunpack.c.l.b16 %v95
    %v232 = vunpack.c.l.b16 %v96
    %v233 = vunpack.c.l.b16 %v97
    %v234 = vunpack.c.l.b16 %v98
    %v235 = vunpack.c.l.b16 %v99
    %v236 = vunpack.c.l.b16 %v100
    %v237 = vunpack.c.l.b16 %v101
    %v238 = vunpack.c.l.b16 %v102
    %v239 = vunpack.c.l.b16 %v103
    %v240 = vunpack.c.l.b16 %v104
    %v241 = vunpack.c.l.b16 %v105
    %v242 = vunpack.c.l.b16 %v106
    %v243 = vunpack.c.l.b16 %v107
    %v244 = vunpack.c.l.b16 %v108
    %v245 = vunpack.c.l.b16 %v109
    %v246 = vunpack.c.l.b16 %v110
    %v247 = vunpack.c.l.b16 %v111
    %v248 = vunpack.c.l.b16 %v112
    %v249 = vunpack.c.l.b16 %v113
    %v250 = vunpack.c.l.b16 %v114
    %v251 = vunpack.c.l.b16 %v115
    %v252 = vunpack.c.l.b16 %v116
    %v253 = vunpack.c.l.b16 %v117
    %v254 = vunpack.c.l.b16 %v118
    %v255 = vunpack.c.l.b16 %v119
    %v256 = vunpack.c.l.b16 %v120
    %v257 = vunpack.c.l.b16 %v121
    %v258 = vunpack.c.l.b16 %v122
    %v259 = vunpack.c.l.b16 %v123
    %v260 = vunpack.c.l.b16 %v124
    %v261 = vunpack.c.l.b16 %v125
    %v262 = vunpack.c.l.b16 %v126
    %v263 = vunpack.c.l.b16 %v127
    %v264 = vunpack.c.l.b16 %v128
    %v265 = vunpack.c.l.b16 %v129
    %v266 = vunpack.c.l.b16 %v130
    %v267 = vunpack.c.l.b16 %v131
    %v268 = vpack.c.b16 %v205, %v204
    %v269 = vpack.c.b16 %v207, %v206
    %v270 = vpack.c.b16 %v209, %v208
    %v271 = vpack.c.b16 %v211, %v210
    %v272 = vpack.c.b16 %v213, %v212
    %v273 = vpack.c.b16 %v215, %v214
    %v274 = vpack.c.b16 %v217, %v216
    %v275 = vpack.c.b16 %v219, %v218
    %v276 = vpack.c.b16 %v221, %v220
    %v277 = vpack.c.b16 %v223, %v222
    %v278 = vpack.c.b16 %v225, %v224
    %v279 = vpack.c.b16 %v227, %v226
    %v280 = vpack.c.b16 %v229, %v228
    %v281 = vpack.c.b16 %v231, %v230
    %v282 = vpack.c.b16 %v233, %v232
    %v283 = vpack.c.b16 %v235, %v234
    %v284 = vpack.c.b16 %v237, %v236
    %v285 = vpack.c.b16 %v239, %v238
    %v286 = vpack.c.b16 %v241, %v240
    %v287 = vpack.c.b16 %v243, %v242
    %v288 = vpack.c.b16 %v245, %v244
    %v289 = vpack.c.b16 %v247, %v246
    %v290 = vpack.c.b16 %v249, %v248
    %v291 = vpack.c.b16 %v251, %v250
    %v292 = vpack.c.b16 %v253, %v252
    %v293 = vpack.c.b16 %v255, %v254
    %v294 = vpack.c.b16 %v257, %v256
    %v295 = vpack.c.b16 %v259, %v258
    %v296 = vpack.c.b16 %v261, %v260
    %v297 = vpack.c.b16 %v263, %v262
    %v298 = vpack.c.b16 %v265, %v264
    %v299 = vpack.c.b16 %v267, %v266
    %v304 = vunpack.c.l.b16 %v132
    %v305 = vunpack.c.l.b16 %v133
    %v306 = vunpack.c.l.b16 %v134
    %v307 = vunpack.c.l.b16 %v135
    %v308 = vpack.c.b16 %v305, %v304
    %v309 = vpack.c.b16 %v307, %v306
    %vm312 = vcmask 261120
    %v314 = vsel %vm312, %v268, 0
    %v317 = vsel %vm312, %v269, 0
    %v320 = vsel %vm312, %v270, 0
    %v323 = vsel %vm312, %v271, 0
    %v326 = vsel %vm312, %v272, 0
    %v329 = vsel %vm312, %v273, 0
    %v332 = vsel %vm312, %v274, 0
    %v335 = vsel %vm312, %v275, 0
    %v338 = vsel %vm312, %v276, 0
    %v341 = vsel %vm312, %v277, 0
    %v344 = vsel %vm312, %v278, 0
    %v347 = vsel %vm312, %v279, 0
    %v350 = vsel %vm312, %v280, 0
    %v353 = vsel %vm312, %v281, 0
    %v356 = vsel %vm312, %v282, 0
    %v359 = vsel %vm312, %v283, 0
    %v362 = vsel %vm312, %v284, 0
    %v365 = vsel %vm312, %v285, 0
    %v368 = vsel %vm312, %v286, 0
    %v371 = vsel %vm312, %v287, 0
    %v374 = vsel %vm312, %v288, 0
    %v377 = vsel %vm312, %v289, 0
    %v380 = vsel %vm312, %v290, 0
    %v383 = vsel %vm312, %v291, 0
    %v386 = vsel %vm312, %v292, 0
    %v389 = vsel %vm312, %v293, 0
    %v392 = vsel %vm312, %v294, 0
    %v395 = vsel %vm312, %v295, 0
    %v398 = vsel %vm312, %v296, 0
    %v401 = vsel %vm312, %v297, 0
    %v404 = vsel %vm312, %v298, 0
    %v407 = vsel %vm312, %v299, 0
    %409 = vmatpush.bf16.msra.mxu0 0
    %410 = vmatpush.bf16.msra.mxu0 0
    %411 = vmatpush.bf16.msra.mxu0 0
    %412 = vmatpush.bf16.msra.mxu0 0
    %413 = vmatpush.bf16.msra.mxu0 0
    %414 = vmatpush.bf16.msra.mxu0 0
    %415 = vmatpush.bf16.msra.mxu0 %v309
    %416 = vmatpush.bf16.msra.mxu0 %v308
    %417 = vmatmul.bf16.gmra.mxu0 %v314
    %v418 = vpop.f32.mrf.mxu0
    %v419 = vadd.f32 %v138, %v418
    %v420 = vpop.f32.mrf.mxu0
    %v421 = vadd.f32 %v138, %v420
    %422 = vmatmul.bf16.gmra.mxu0 %v317
    %v423 = vpop.f32.mrf.mxu0
    %v424 = vadd.f32 %v138, %v423
    %v425 = vpop.f32.mrf.mxu0
    %v426 = vadd.f32 %v138, %v425
    %427 = vmatmul.bf16.gmra.mxu0 %v320
    %v428 = vpop.f32.mrf.mxu0
    %v429 = vadd.f32 %v138, %v428
    %v430 = vpop.f32.mrf.mxu0
    %v431 = vadd.f32 %v138, %v430
    %432 = vmatmul.bf16.gmra.mxu0 %v323
    %v433 = vpop.f32.mrf.mxu0
    %v434 = vadd.f32 %v138, %v433
    %v435 = vpop.f32.mrf.mxu0
    %v436 = vadd.f32 %v138, %v435
    %437 = vmatmul.bf16.gmra.mxu0 %v326
    %v438 = vpop.f32.mrf.mxu0
    %v439 = vadd.f32 %v138, %v438
    %v440 = vpop.f32.mrf.mxu0
    %v441 = vadd.f32 %v138, %v440
    %442 = vmatmul.bf16.gmra.mxu0 %v329
    %v443 = vpop.f32.mrf.mxu0
    %v444 = vadd.f32 %v138, %v443
    %v445 = vpop.f32.mrf.mxu0
    %v446 = vadd.f32 %v138, %v445
    %447 = vmatmul.bf16.gmra.mxu0 %v332
    %v448 = vpop.f32.mrf.mxu0
    %v449 = vadd.f32 %v138, %v448
    %v450 = vpop.f32.mrf.mxu0
    %v451 = vadd.f32 %v138, %v450
    %452 = vmatmul.bf16.gmra.mxu0 %v335
    %v453 = vpop.f32.mrf.mxu0
    %v454 = vadd.f32 %v138, %v453
    %v455 = vpop.f32.mrf.mxu0
    %v456 = vadd.f32 %v138, %v455
    %457 = vmatmul.bf16.gmra.mxu0 %v338
    %v458 = vpop.f32.mrf.mxu0
    %v459 = vadd.f32 %v138, %v458
    %v460 = vpop.f32.mrf.mxu0
    %v461 = vadd.f32 %v138, %v460
    %462 = vmatmul.bf16.gmra.mxu0 %v341
    %v463 = vpop.f32.mrf.mxu0
    %v464 = vadd.f32 %v138, %v463
    %v465 = vpop.f32.mrf.mxu0
    %v466 = vadd.f32 %v138, %v465
    %467 = vmatmul.bf16.gmra.mxu0 %v344
    %v468 = vpop.f32.mrf.mxu0
    %v469 = vadd.f32 %v138, %v468
    %v470 = vpop.f32.mrf.mxu0
    %v471 = vadd.f32 %v138, %v470
    %472 = vmatmul.bf16.gmra.mxu0 %v347
    %v473 = vpop.f32.mrf.mxu0
    %v474 = vadd.f32 %v138, %v473
    %v475 = vpop.f32.mrf.mxu0
    %v476 = vadd.f32 %v138, %v475
    %477 = vmatmul.bf16.gmra.mxu0 %v350
    %v478 = vpop.f32.mrf.mxu0
    %v479 = vadd.f32 %v138, %v478
    %v480 = vpop.f32.mrf.mxu0
    %v481 = vadd.f32 %v138, %v480
    %482 = vmatmul.bf16.gmra.mxu0 %v353
    %v483 = vpop.f32.mrf.mxu0
    %v484 = vadd.f32 %v138, %v483
    %v485 = vpop.f32.mrf.mxu0
    %v486 = vadd.f32 %v138, %v485
    %487 = vmatmul.bf16.gmra.mxu0 %v356
    %v488 = vpop.f32.mrf.mxu0
    %v489 = vadd.f32 %v138, %v488
    %v490 = vpop.f32.mrf.mxu0
    %v491 = vadd.f32 %v138, %v490
    %492 = vmatmul.bf16.gmra.mxu0 %v359
    %v493 = vpop.f32.mrf.mxu0
    %v494 = vadd.f32 %v138, %v493
    %v495 = vpop.f32.mrf.mxu0
    %v496 = vadd.f32 %v138, %v495
    %497 = vmatmul.bf16.gmra.mxu0 %v362
    %v498 = vpop.f32.mrf.mxu0
    %v499 = vadd.f32 %v138, %v498
    %v500 = vpop.f32.mrf.mxu0
    %v501 = vadd.f32 %v138, %v500
    %502 = vmatmul.bf16.gmra.mxu0 %v365
    %v503 = vpop.f32.mrf.mxu0
    %v504 = vadd.f32 %v138, %v503
    %v505 = vpop.f32.mrf.mxu0
    %v506 = vadd.f32 %v138, %v505
    %507 = vmatmul.bf16.gmra.mxu0 %v368
    %v508 = vpop.f32.mrf.mxu0
    %v509 = vadd.f32 %v138, %v508
    %v510 = vpop.f32.mrf.mxu0
    %v511 = vadd.f32 %v138, %v510
    %512 = vmatmul.bf16.gmra.mxu0 %v371
    %v513 = vpop.f32.mrf.mxu0
    %v514 = vadd.f32 %v138, %v513
    %v515 = vpop.f32.mrf.mxu0
    %v516 = vadd.f32 %v138, %v515
    %517 = vmatmul.bf16.gmra.mxu0 %v374
    %v518 = vpop.f32.mrf.mxu0
    %v519 = vadd.f32 %v138, %v518
    %v520 = vpop.f32.mrf.mxu0
    %v521 = vadd.f32 %v138, %v520
    %522 = vmatmul.bf16.gmra.mxu0 %v377
    %v523 = vpop.f32.mrf.mxu0
    %v524 = vadd.f32 %v138, %v523
    %v525 = vpop.f32.mrf.mxu0
    %v526 = vadd.f32 %v138, %v525
    %527 = vmatmul.bf16.gmra.mxu0 %v380
    %v528 = vpop.f32.mrf.mxu0
    %v529 = vadd.f32 %v138, %v528
    %v530 = vpop.f32.mrf.mxu0
    %v531 = vadd.f32 %v138, %v530
    %532 = vmatmul.bf16.gmra.mxu0 %v383
    %v533 = vpop.f32.mrf.mxu0
    %v534 = vadd.f32 %v138, %v533
    %v535 = vpop.f32.mrf.mxu0
    %v536 = vadd.f32 %v138, %v535
    %537 = vmatmul.bf16.gmra.mxu0 %v386
    %v538 = vpop.f32.mrf.mxu0
    %v539 = vadd.f32 %v138, %v538
    %v540 = vpop.f32.mrf.mxu0
    %v541 = vadd.f32 %v138, %v540
    %542 = vmatmul.bf16.gmra.mxu0 %v389
    %v543 = vpop.f32.mrf.mxu0
    %v544 = vadd.f32 %v138, %v543
    %v545 = vpop.f32.mrf.mxu0
    %v546 = vadd.f32 %v138, %v545
    %547 = vmatmul.bf16.gmra.mxu0 %v392
    %v548 = vpop.f32.mrf.mxu0
    %v549 = vadd.f32 %v138, %v548
    %v550 = vpop.f32.mrf.mxu0
    %v551 = vadd.f32 %v138, %v550
    %552 = vmatmul.bf16.gmra.mxu0 %v395
    %v553 = vpop.f32.mrf.mxu0
    %v554 = vadd.f32 %v138, %v553
    %v555 = vpop.f32.mrf.mxu0
    %v556 = vadd.f32 %v138, %v555
    %557 = vmatmul.bf16.gmra.mxu0 %v398
    %v558 = vpop.f32.mrf.mxu0
    %v559 = vadd.f32 %v138, %v558
    %v560 = vpop.f32.mrf.mxu0
    %v561 = vadd.f32 %v138, %v560
    %562 = vmatmul.bf16.gmra.mxu0 %v401
    %v563 = vpop.f32.mrf.mxu0
    %v564 = vadd.f32 %v138, %v563
    %v565 = vpop.f32.mrf.mxu0
    %v566 = vadd.f32 %v138, %v565
    %567 = vmatmul.bf16.gmra.mxu0 %v404
    %v568 = vpop.f32.mrf.mxu0
    %v569 = vadd.f32 %v138, %v568
    %v570 = vpop.f32.mrf.mxu0
    %v571 = vadd.f32 %v138, %v570
    %572 = vmatmul.bf16.gmra.mxu0 %v407
    %v573 = vpop.f32.mrf.mxu0
    %v574 = vadd.f32 %v138, %v573
    %v575 = vpop.f32.mrf.mxu0
    %v576 = vadd.f32 %v138, %v575
    %577 = vdwg.mxu0
    %v578 = vpack.c.bf16 %v421, %v419
    %v579 = vpack.c.bf16 %v426, %v424
    %v580 = vpack.c.bf16 %v431, %v429
    %v581 = vpack.c.bf16 %v436, %v434
    %v582 = vpack.c.bf16 %v441, %v439
    %v583 = vpack.c.bf16 %v446, %v444
    %v584 = vpack.c.bf16 %v451, %v449
    %v585 = vpack.c.bf16 %v456, %v454
    %v586 = vpack.c.bf16 %v461, %v459
    %v587 = vpack.c.bf16 %v466, %v464
    %v588 = vpack.c.bf16 %v471, %v469
    %v589 = vpack.c.bf16 %v476, %v474
    %v590 = vpack.c.bf16 %v481, %v479
    %v591 = vpack.c.bf16 %v486, %v484
    %v592 = vpack.c.bf16 %v491, %v489
    %v593 = vpack.c.bf16 %v496, %v494
    %v594 = vpack.c.bf16 %v501, %v499
    %v595 = vpack.c.bf16 %v506, %v504
    %v596 = vpack.c.bf16 %v511, %v509
    %v597 = vpack.c.bf16 %v516, %v514
    %v598 = vpack.c.bf16 %v521, %v519
    %v599 = vpack.c.bf16 %v526, %v524
    %v600 = vpack.c.bf16 %v531, %v529
    %v601 = vpack.c.bf16 %v536, %v534
    %v602 = vpack.c.bf16 %v541, %v539
    %v603 = vpack.c.bf16 %v546, %v544
    %v604 = vpack.c.bf16 %v551, %v549
    %v605 = vpack.c.bf16 %v556, %v554
    %v606 = vpack.c.bf16 %v561, %v559
    %v607 = vpack.c.bf16 %v566, %v564
    %v608 = vpack.c.bf16 %v571, %v569
    %v609 = vpack.c.bf16 %v576, %v574
    %v610 = vld [vmem:[%s3] sm:$0xf]
    %v611 = vld [vmem:[%s3 + $0x4] sm:$0xf]
    %v612 = vld [vmem:[%s3 + $0x8] sm:$0xf]
    %v613 = vld [vmem:[%s3 + $0xc] sm:$0xf]
    %v614 = vld [vmem:[%s4] sm:$0x1]
    %v616 = vperm.slane %v614, 0
    %v622 = vunpack.c.l.b16 %v610
    %v623 = vunpack.c.l.b16 %v611
    %v624 = vunpack.c.l.b16 %v612
    %v625 = vunpack.c.l.b16 %v613
    %v626 = vpack.c.b16 %v623, %v622
    %v627 = vpack.c.b16 %v625, %v624
    %v631 = vsel %vm312, %v578, 0
    %v634 = vsel %vm312, %v579, 0
    %v637 = vsel %vm312, %v580, 0
    %v640 = vsel %vm312, %v581, 0
    %v643 = vsel %vm312, %v582, 0
    %v646 = vsel %vm312, %v583, 0
    %v649 = vsel %vm312, %v584, 0
    %v652 = vsel %vm312, %v585, 0
    %v655 = vsel %vm312, %v586, 0
    %v658 = vsel %vm312, %v587, 0
    %v661 = vsel %vm312, %v588, 0
    %v664 = vsel %vm312, %v589, 0
    %v667 = vsel %vm312, %v590, 0
    %v670 = vsel %vm312, %v591, 0
    %v673 = vsel %vm312, %v592, 0
    %v676 = vsel %vm312, %v593, 0
    %v679 = vsel %vm312, %v594, 0
    %v682 = vsel %vm312, %v595, 0
    %v685 = vsel %vm312, %v596, 0
    %v688 = vsel %vm312, %v597, 0
    %v691 = vsel %vm312, %v598, 0
    %v694 = vsel %vm312, %v599, 0
    %v697 = vsel %vm312, %v600, 0
    %v700 = vsel %vm312, %v601, 0
    %v703 = vsel %vm312, %v602, 0
    %v706 = vsel %vm312, %v603, 0
    %v709 = vsel %vm312, %v604, 0
    %v712 = vsel %vm312, %v605, 0
    %v715 = vsel %vm312, %v606, 0
    %v718 = vsel %vm312, %v607, 0
    %v721 = vsel %vm312, %v608, 0
    %v724 = vsel %vm312, %v609, 0
    %726 = vmatpush.bf16.msra.mxu0 0
    %727 = vmatpush.bf16.msra.mxu0 0
    %728 = vmatpush.bf16.msra.mxu0 0
    %729 = vmatpush.bf16.msra.mxu0 0
    %730 = vmatpush.bf16.msra.mxu0 0
    %731 = vmatpush.bf16.msra.mxu0 0
    %732 = vmatpush.bf16.msra.mxu0 %v627
    %733 = vmatpush.bf16.msra.mxu0 %v626
    %734 = vmatmul.bf16.gmra.mxu0 %v631
    %v735 = vpop.f32.mrf.mxu0
    %v736 = vadd.f32 %v616, %v735
    %v737 = vpop.f32.mrf.mxu0
    %v738 = vadd.f32 %v616, %v737
    %739 = vmatmul.bf16.gmra.mxu0 %v634
    %v740 = vpop.f32.mrf.mxu0
    %v741 = vadd.f32 %v616, %v740
    %v742 = vpop.f32.mrf.mxu0
    %v743 = vadd.f32 %v616, %v742
    %744 = vmatmul.bf16.gmra.mxu0 %v637
    %v745 = vpop.f32.mrf.mxu0
    %v746 = vadd.f32 %v616, %v745
    %v747 = vpop.f32.mrf.mxu0
    %v748 = vadd.f32 %v616, %v747
    %749 = vmatmul.bf16.gmra.mxu0 %v640
    %v750 = vpop.f32.mrf.mxu0
    %v751 = vadd.f32 %v616, %v750
    %v752 = vpop.f32.mrf.mxu0
    %v753 = vadd.f32 %v616, %v752
    %754 = vmatmul.bf16.gmra.mxu0 %v643
    %v755 = vpop.f32.mrf.mxu0
    %v756 = vadd.f32 %v616, %v755
    %v757 = vpop.f32.mrf.mxu0
    %v758 = vadd.f32 %v616, %v757
    %759 = vmatmul.bf16.gmra.mxu0 %v646
    %v760 = vpop.f32.mrf.mxu0
    %v761 = vadd.f32 %v616, %v760
    %v762 = vpop.f32.mrf.mxu0
    %v763 = vadd.f32 %v616, %v762
    %764 = vmatmul.bf16.gmra.mxu0 %v649
    %v765 = vpop.f32.mrf.mxu0
    %v766 = vadd.f32 %v616, %v765
    %v767 = vpop.f32.mrf.mxu0
    %v768 = vadd.f32 %v616, %v767
    %769 = vmatmul.bf16.gmra.mxu0 %v652
    %v770 = vpop.f32.mrf.mxu0
    %v771 = vadd.f32 %v616, %v770
    %v772 = vpop.f32.mrf.mxu0
    %v773 = vadd.f32 %v616, %v772
    %774 = vmatmul.bf16.gmra.mxu0 %v655
    %v775 = vpop.f32.mrf.mxu0
    %v776 = vadd.f32 %v616, %v775
    %v777 = vpop.f32.mrf.mxu0
    %v778 = vadd.f32 %v616, %v777
    %779 = vmatmul.bf16.gmra.mxu0 %v658
    %v780 = vpop.f32.mrf.mxu0
    %v781 = vadd.f32 %v616, %v780
    %v782 = vpop.f32.mrf.mxu0
    %v783 = vadd.f32 %v616, %v782
    %784 = vmatmul.bf16.gmra.mxu0 %v661
    %v785 = vpop.f32.mrf.mxu0
    %v786 = vadd.f32 %v616, %v785
    %v787 = vpop.f32.mrf.mxu0
    %v788 = vadd.f32 %v616, %v787
    %789 = vmatmul.bf16.gmra.mxu0 %v664
    %v790 = vpop.f32.mrf.mxu0
    %v791 = vadd.f32 %v616, %v790
    %v792 = vpop.f32.mrf.mxu0
    %v793 = vadd.f32 %v616, %v792
    %794 = vmatmul.bf16.gmra.mxu0 %v667
    %v795 = vpop.f32.mrf.mxu0
    %v796 = vadd.f32 %v616, %v795
    %v797 = vpop.f32.mrf.mxu0
    %v798 = vadd.f32 %v616, %v797
    %799 = vmatmul.bf16.gmra.mxu0 %v670
    %v800 = vpop.f32.mrf.mxu0
    %v801 = vadd.f32 %v616, %v800
    %v802 = vpop.f32.mrf.mxu0
    %v803 = vadd.f32 %v616, %v802
    %804 = vmatmul.bf16.gmra.mxu0 %v673
    %v805 = vpop.f32.mrf.mxu0
    %v806 = vadd.f32 %v616, %v805
    %v807 = vpop.f32.mrf.mxu0
    %v808 = vadd.f32 %v616, %v807
    %809 = vmatmul.bf16.gmra.mxu0 %v676
    %v810 = vpop.f32.mrf.mxu0
    %v811 = vadd.f32 %v616, %v810
    %v812 = vpop.f32.mrf.mxu0
    %v813 = vadd.f32 %v616, %v812
    %814 = vmatmul.bf16.gmra.mxu0 %v679
    %v815 = vpop.f32.mrf.mxu0
    %v816 = vadd.f32 %v616, %v815
    %v817 = vpop.f32.mrf.mxu0
    %v818 = vadd.f32 %v616, %v817
    %819 = vmatmul.bf16.gmra.mxu0 %v682
    %v820 = vpop.f32.mrf.mxu0
    %v821 = vadd.f32 %v616, %v820
    %v822 = vpop.f32.mrf.mxu0
    %v823 = vadd.f32 %v616, %v822
    %824 = vmatmul.bf16.gmra.mxu0 %v685
    %v825 = vpop.f32.mrf.mxu0
    %v826 = vadd.f32 %v616, %v825
    %v827 = vpop.f32.mrf.mxu0
    %v828 = vadd.f32 %v616, %v827
    %829 = vmatmul.bf16.gmra.mxu0 %v688
    %v830 = vpop.f32.mrf.mxu0
    %v831 = vadd.f32 %v616, %v830
    %v832 = vpop.f32.mrf.mxu0
    %v833 = vadd.f32 %v616, %v832
    %834 = vmatmul.bf16.gmra.mxu0 %v691
    %v835 = vpop.f32.mrf.mxu0
    %v836 = vadd.f32 %v616, %v835
    %v837 = vpop.f32.mrf.mxu0
    %v838 = vadd.f32 %v616, %v837
    %839 = vmatmul.bf16.gmra.mxu0 %v694
    %v840 = vpop.f32.mrf.mxu0
    %v841 = vadd.f32 %v616, %v840
    %v842 = vpop.f32.mrf.mxu0
    %v843 = vadd.f32 %v616, %v842
    %844 = vmatmul.bf16.gmra.mxu0 %v697
    %v845 = vpop.f32.mrf.mxu0
    %v846 = vadd.f32 %v616, %v845
    %v847 = vpop.f32.mrf.mxu0
    %v848 = vadd.f32 %v616, %v847
    %849 = vmatmul.bf16.gmra.mxu0 %v700
    %v850 = vpop.f32.mrf.mxu0
    %v851 = vadd.f32 %v616, %v850
    %v852 = vpop.f32.mrf.mxu0
    %v853 = vadd.f32 %v616, %v852
    %854 = vmatmul.bf16.gmra.mxu0 %v703
    %v855 = vpop.f32.mrf.mxu0
    %v856 = vadd.f32 %v616, %v855
    %v857 = vpop.f32.mrf.mxu0
    %v858 = vadd.f32 %v616, %v857
    %859 = vmatmul.bf16.gmra.mxu0 %v706
    %v860 = vpop.f32.mrf.mxu0
    %v861 = vadd.f32 %v616, %v860
    %v862 = vpop.f32.mrf.mxu0
    %v863 = vadd.f32 %v616, %v862
    %864 = vmatmul.bf16.gmra.mxu0 %v709
    %v865 = vpop.f32.mrf.mxu0
    %v866 = vadd.f32 %v616, %v865
    %v867 = vpop.f32.mrf.mxu0
    %v868 = vadd.f32 %v616, %v867
    %869 = vmatmul.bf16.gmra.mxu0 %v712
    %v870 = vpop.f32.mrf.mxu0
    %v871 = vadd.f32 %v616, %v870
    %v872 = vpop.f32.mrf.mxu0
    %v873 = vadd.f32 %v616, %v872
    %874 = vmatmul.bf16.gmra.mxu0 %v715
    %v875 = vpop.f32.mrf.mxu0
    %v876 = vadd.f32 %v616, %v875
    %v877 = vpop.f32.mrf.mxu0
    %v878 = vadd.f32 %v616, %v877
    %879 = vmatmul.bf16.gmra.mxu0 %v718
    %v880 = vpop.f32.mrf.mxu0
    %v881 = vadd.f32 %v616, %v880
    %v882 = vpop.f32.mrf.mxu0
    %v883 = vadd.f32 %v616, %v882
    %884 = vmatmul.bf16.gmra.mxu0 %v721
    %v885 = vpop.f32.mrf.mxu0
    %v886 = vadd.f32 %v616, %v885
    %v887 = vpop.f32.mrf.mxu0
    %v888 = vadd.f32 %v616, %v887
    %889 = vmatmul.bf16.gmra.mxu0 %v724
    %v890 = vpop.f32.mrf.mxu0
    %v891 = vadd.f32 %v616, %v890
    %v892 = vpop.f32.mrf.mxu0
    %v893 = vadd.f32 %v616, %v892
    %894 = vdwg.mxu0
    %v895 = vpack.c.bf16 %v738, %v736
    %v896 = vpack.c.bf16 %v743, %v741
    %v897 = vpack.c.bf16 %v748, %v746
    %v898 = vpack.c.bf16 %v753, %v751
    %v899 = vpack.c.bf16 %v758, %v756
    %v900 = vpack.c.bf16 %v763, %v761
    %v901 = vpack.c.bf16 %v768, %v766
    %v902 = vpack.c.bf16 %v773, %v771
    %v903 = vpack.c.bf16 %v778, %v776
    %v904 = vpack.c.bf16 %v783, %v781
    %v905 = vpack.c.bf16 %v788, %v786
    %v906 = vpack.c.bf16 %v793, %v791
    %v907 = vpack.c.bf16 %v798, %v796
    %v908 = vpack.c.bf16 %v803, %v801
    %v909 = vpack.c.bf16 %v808, %v806
    %v910 = vpack.c.bf16 %v813, %v811
    %v911 = vpack.c.bf16 %v818, %v816
    %v912 = vpack.c.bf16 %v823, %v821
    %v913 = vpack.c.bf16 %v828, %v826
    %v914 = vpack.c.bf16 %v833, %v831
    %v915 = vpack.c.bf16 %v838, %v836
    %v916 = vpack.c.bf16 %v843, %v841
    %v917 = vpack.c.bf16 %v848, %v846
    %v918 = vpack.c.bf16 %v853, %v851
    %v919 = vpack.c.bf16 %v858, %v856
    %v920 = vpack.c.bf16 %v863, %v861
    %v921 = vpack.c.bf16 %v868, %v866
    %v922 = vpack.c.bf16 %v873, %v871
    %v923 = vpack.c.bf16 %v878, %v876
    %v924 = vpack.c.bf16 %v883, %v881
    %v925 = vpack.c.bf16 %v888, %v886
    %v926 = vpack.c.bf16 %v893, %v891
    %v927 = vld [vmem:[%s5] sm:$0xf]
    %v928 = vld [vmem:[%s5 + $0x4] sm:$0xf]
    %v929 = vld [vmem:[%s5 + $0x8] sm:$0xf]
    %v930 = vld [vmem:[%s5 + $0xc] sm:$0xf]
    %v931 = vld [vmem:[%s5 + $0x10] sm:$0xf]
    %v932 = vld [vmem:[%s5 + $0x14] sm:$0xf]
    %v933 = vld [vmem:[%s5 + $0x18] sm:$0xf]
    %v934 = vld [vmem:[%s5 + $0x1c] sm:$0xf]
    %v935 = vld [vmem:[#allocation5] sm:$0x1]
    %v937 = vperm.slane %v935, 0
    %v947 = vunpack.c.l.b16 %v927
    %v948 = vunpack.c.l.b16 %v928
    %v949 = vunpack.c.l.b16 %v929
    %v950 = vunpack.c.l.b16 %v930
    %v951 = vunpack.c.l.b16 %v931
    %v952 = vunpack.c.l.b16 %v932
    %v953 = vunpack.c.l.b16 %v933
    %v954 = vunpack.c.l.b16 %v934
    %v955 = vpack.c.b16 %v948, %v947
    %v956 = vpack.c.b16 %v950, %v949
    %v957 = vpack.c.b16 %v952, %v951
    %v958 = vpack.c.b16 %v954, %v953
    %vm963 = vcmask 523264
    %v965 = vsel %vm963, %v895, 0
    %v968 = vsel %vm963, %v896, 0
    %v971 = vsel %vm963, %v897, 0
    %v974 = vsel %vm963, %v898, 0
    %v977 = vsel %vm963, %v899, 0
    %v980 = vsel %vm963, %v900, 0
    %v983 = vsel %vm963, %v901, 0
    %v986 = vsel %vm963, %v902, 0
    %v989 = vsel %vm963, %v903, 0
    %v992 = vsel %vm963, %v904, 0
    %v995 = vsel %vm963, %v905, 0
    %v998 = vsel %vm963, %v906, 0
    %v1001 = vsel %vm963, %v907, 0
    %v1004 = vsel %vm963, %v908, 0
    %v1007 = vsel %vm963, %v909, 0
    %v1010 = vsel %vm963, %v910, 0
    %v1013 = vsel %vm963, %v911, 0
    %v1016 = vsel %vm963, %v912, 0
    %v1019 = vsel %vm963, %v913, 0
    %v1022 = vsel %vm963, %v914, 0
    %v1025 = vsel %vm963, %v915, 0
    %v1028 = vsel %vm963, %v916, 0
    %v1031 = vsel %vm963, %v917, 0
    %v1034 = vsel %vm963, %v918, 0
    %v1037 = vsel %vm963, %v919, 0
    %v1040 = vsel %vm963, %v920, 0
    %v1043 = vsel %vm963, %v921, 0
    %v1046 = vsel %vm963, %v922, 0
    %v1049 = vsel %vm963, %v923, 0
    %v1052 = vsel %vm963, %v924, 0
    %v1055 = vsel %vm963, %v925, 0
    %v1058 = vsel %vm963, %v926, 0
    %1060 = vmatpush.bf16.msra.mxu0 0
    %1061 = vmatpush.bf16.msra.mxu0 0
    %1062 = vmatpush.bf16.msra.mxu0 0
    %1063 = vmatpush.bf16.msra.mxu0 0
    %1064 = vmatpush.bf16.msra.mxu0 %v958
    %1065 = vmatpush.bf16.msra.mxu0 %v957
    %1066 = vmatpush.bf16.msra.mxu0 %v956
    %1067 = vmatpush.bf16.msra.mxu0 %v955
    %1068 = vmatmul.bf16.gmra.mxu0 %v965
    %v1069 = vpop.f32.mrf.mxu0
    %v1070 = vadd.f32 %v937, %v1069
    %v1071 = vpop.f32.mrf.mxu0
    %v1072 = vadd.f32 %v937, %v1071
    %1073 = vmatmul.bf16.gmra.mxu0 %v968
    %v1074 = vpop.f32.mrf.mxu0
    %v1075 = vadd.f32 %v937, %v1074
    %v1076 = vpop.f32.mrf.mxu0
    %v1077 = vadd.f32 %v937, %v1076
    %1078 = vmatmul.bf16.gmra.mxu0 %v971
    %v1079 = vpop.f32.mrf.mxu0
    %v1080 = vadd.f32 %v937, %v1079
    %v1081 = vpop.f32.mrf.mxu0
    %v1082 = vadd.f32 %v937, %v1081
    %1083 = vmatmul.bf16.gmra.mxu0 %v974
    %v1084 = vpop.f32.mrf.mxu0
    %v1085 = vadd.f32 %v937, %v1084
    %v1086 = vpop.f32.mrf.mxu0
    %v1087 = vadd.f32 %v937, %v1086
    %1088 = vmatmul.bf16.gmra.mxu0 %v977
    %v1089 = vpop.f32.mrf.mxu0
    %v1090 = vadd.f32 %v937, %v1089
    %v1091 = vpop.f32.mrf.mxu0
    %v1092 = vadd.f32 %v937, %v1091
    %1093 = vmatmul.bf16.gmra.mxu0 %v980
    %v1094 = vpop.f32.mrf.mxu0
    %v1095 = vadd.f32 %v937, %v1094
    %v1096 = vpop.f32.mrf.mxu0
    %v1097 = vadd.f32 %v937, %v1096
    %1098 = vmatmul.bf16.gmra.mxu0 %v983
    %v1099 = vpop.f32.mrf.mxu0
    %v1100 = vadd.f32 %v937, %v1099
    %v1101 = vpop.f32.mrf.mxu0
    %v1102 = vadd.f32 %v937, %v1101
    %1103 = vmatmul.bf16.gmra.mxu0 %v986
    %v1104 = vpop.f32.mrf.mxu0
    %v1105 = vadd.f32 %v937, %v1104
    %v1106 = vpop.f32.mrf.mxu0
    %v1107 = vadd.f32 %v937, %v1106
    %1108 = vmatmul.bf16.gmra.mxu0 %v989
    %v1109 = vpop.f32.mrf.mxu0
    %v1110 = vadd.f32 %v937, %v1109
    %v1111 = vpop.f32.mrf.mxu0
    %v1112 = vadd.f32 %v937, %v1111
    %1113 = vmatmul.bf16.gmra.mxu0 %v992
    %v1114 = vpop.f32.mrf.mxu0
    %v1115 = vadd.f32 %v937, %v1114
    %v1116 = vpop.f32.mrf.mxu0
    %v1117 = vadd.f32 %v937, %v1116
    %1118 = vmatmul.bf16.gmra.mxu0 %v995
    %v1119 = vpop.f32.mrf.mxu0
    %v1120 = vadd.f32 %v937, %v1119
    %v1121 = vpop.f32.mrf.mxu0
    %v1122 = vadd.f32 %v937, %v1121
    %1123 = vmatmul.bf16.gmra.mxu0 %v998
    %v1124 = vpop.f32.mrf.mxu0
    %v1125 = vadd.f32 %v937, %v1124
    %v1126 = vpop.f32.mrf.mxu0
    %v1127 = vadd.f32 %v937, %v1126
    %1128 = vmatmul.bf16.gmra.mxu0 %v1001
    %v1129 = vpop.f32.mrf.mxu0
    %v1130 = vadd.f32 %v937, %v1129
    %v1131 = vpop.f32.mrf.mxu0
    %v1132 = vadd.f32 %v937, %v1131
    %1133 = vmatmul.bf16.gmra.mxu0 %v1004
    %v1134 = vpop.f32.mrf.mxu0
    %v1135 = vadd.f32 %v937, %v1134
    %v1136 = vpop.f32.mrf.mxu0
    %v1137 = vadd.f32 %v937, %v1136
    %1138 = vmatmul.bf16.gmra.mxu0 %v1007
    %v1139 = vpop.f32.mrf.mxu0
    %v1140 = vadd.f32 %v937, %v1139
    %v1141 = vpop.f32.mrf.mxu0
    %v1142 = vadd.f32 %v937, %v1141
    %1143 = vmatmul.bf16.gmra.mxu0 %v1010
    %v1144 = vpop.f32.mrf.mxu0
    %v1145 = vadd.f32 %v937, %v1144
    %v1146 = vpop.f32.mrf.mxu0
    %v1147 = vadd.f32 %v937, %v1146
    %1148 = vmatmul.bf16.gmra.mxu0 %v1013
    %v1149 = vpop.f32.mrf.mxu0
    %v1150 = vadd.f32 %v937, %v1149
    %v1151 = vpop.f32.mrf.mxu0
    %v1152 = vadd.f32 %v937, %v1151
    %1153 = vmatmul.bf16.gmra.mxu0 %v1016
    %v1154 = vpop.f32.mrf.mxu0
    %v1155 = vadd.f32 %v937, %v1154
    %v1156 = vpop.f32.mrf.mxu0
    %v1157 = vadd.f32 %v937, %v1156
    %1158 = vmatmul.bf16.gmra.mxu0 %v1019
    %v1159 = vpop.f32.mrf.mxu0
    %v1160 = vadd.f32 %v937, %v1159
    %v1161 = vpop.f32.mrf.mxu0
    %v1162 = vadd.f32 %v937, %v1161
    %1163 = vmatmul.bf16.gmra.mxu0 %v1022
    %v1164 = vpop.f32.mrf.mxu0
    %v1165 = vadd.f32 %v937, %v1164
    %v1166 = vpop.f32.mrf.mxu0
    %v1167 = vadd.f32 %v937, %v1166
    %1168 = vmatmul.bf16.gmra.mxu0 %v1025
    %v1169 = vpop.f32.mrf.mxu0
    %v1170 = vadd.f32 %v937, %v1169
    %v1171 = vpop.f32.mrf.mxu0
    %v1172 = vadd.f32 %v937, %v1171
    %1173 = vmatmul.bf16.gmra.mxu0 %v1028
    %v1174 = vpop.f32.mrf.mxu0
    %v1175 = vadd.f32 %v937, %v1174
    %v1176 = vpop.f32.mrf.mxu0
    %v1177 = vadd.f32 %v937, %v1176
    %1178 = vmatmul.bf16.gmra.mxu0 %v1031
    %v1179 = vpop.f32.mrf.mxu0
    %v1180 = vadd.f32 %v937, %v1179
    %v1181 = vpop.f32.mrf.mxu0
    %v1182 = vadd.f32 %v937, %v1181
    %1183 = vmatmul.bf16.gmra.mxu0 %v1034
    %v1184 = vpop.f32.mrf.mxu0
    %v1185 = vadd.f32 %v937, %v1184
    %v1186 = vpop.f32.mrf.mxu0
    %v1187 = vadd.f32 %v937, %v1186
    %1188 = vmatmul.bf16.gmra.mxu0 %v1037
    %v1189 = vpop.f32.mrf.mxu0
    %v1190 = vadd.f32 %v937, %v1189
    %v1191 = vpop.f32.mrf.mxu0
    %v1192 = vadd.f32 %v937, %v1191
    %1193 = vmatmul.bf16.gmra.mxu0 %v1040
    %v1194 = vpop.f32.mrf.mxu0
    %v1195 = vadd.f32 %v937, %v1194
    %v1196 = vpop.f32.mrf.mxu0
    %v1197 = vadd.f32 %v937, %v1196
    %1198 = vmatmul.bf16.gmra.mxu0 %v1043
    %v1199 = vpop.f32.mrf.mxu0
    %v1200 = vadd.f32 %v937, %v1199
    %v1201 = vpop.f32.mrf.mxu0
    %v1202 = vadd.f32 %v937, %v1201
    %1203 = vmatmul.bf16.gmra.mxu0 %v1046
    %v1204 = vpop.f32.mrf.mxu0
    %v1205 = vadd.f32 %v937, %v1204
    %v1206 = vpop.f32.mrf.mxu0
    %v1207 = vadd.f32 %v937, %v1206
    %1208 = vmatmul.bf16.gmra.mxu0 %v1049
    %v1209 = vpop.f32.mrf.mxu0
    %v1210 = vadd.f32 %v937, %v1209
    %v1211 = vpop.f32.mrf.mxu0
    %v1212 = vadd.f32 %v937, %v1211
    %1213 = vmatmul.bf16.gmra.mxu0 %v1052
    %v1214 = vpop.f32.mrf.mxu0
    %v1215 = vadd.f32 %v937, %v1214
    %v1216 = vpop.f32.mrf.mxu0
    %v1217 = vadd.f32 %v937, %v1216
    %1218 = vmatmul.bf16.gmra.mxu0 %v1055
    %v1219 = vpop.f32.mrf.mxu0
    %v1220 = vadd.f32 %v937, %v1219
    %v1221 = vpop.f32.mrf.mxu0
    %v1222 = vadd.f32 %v937, %v1221
    %1223 = vmatmul.bf16.gmra.mxu0 %v1058
    %v1224 = vpop.f32.mrf.mxu0
    %v1225 = vadd.f32 %v937, %v1224
    %v1226 = vpop.f32.mrf.mxu0
    %v1227 = vadd.f32 %v937, %v1226
    %1228 = vdwg.mxu0
    %v1229 = vpack.c.bf16 %v1072, %v1070
    %v1230 = vpack.c.bf16 %v1077, %v1075
    %v1231 = vpack.c.bf16 %v1082, %v1080
    %v1232 = vpack.c.bf16 %v1087, %v1085
    %v1233 = vpack.c.bf16 %v1092, %v1090
    %v1234 = vpack.c.bf16 %v1097, %v1095
    %v1235 = vpack.c.bf16 %v1102, %v1100
    %v1236 = vpack.c.bf16 %v1107, %v1105
    %v1237 = vpack.c.bf16 %v1112, %v1110
    %v1238 = vpack.c.bf16 %v1117, %v1115
    %v1239 = vpack.c.bf16 %v1122, %v1120
    %v1240 = vpack.c.bf16 %v1127, %v1125
    %v1241 = vpack.c.bf16 %v1132, %v1130
    %v1242 = vpack.c.bf16 %v1137, %v1135
    %v1243 = vpack.c.bf16 %v1142, %v1140
    %v1244 = vpack.c.bf16 %v1147, %v1145
    %v1245 = vpack.c.bf16 %v1152, %v1150
    %v1246 = vpack.c.bf16 %v1157, %v1155
    %v1247 = vpack.c.bf16 %v1162, %v1160
    %v1248 = vpack.c.bf16 %v1167, %v1165
    %v1249 = vpack.c.bf16 %v1172, %v1170
    %v1250 = vpack.c.bf16 %v1177, %v1175
    %v1251 = vpack.c.bf16 %v1182, %v1180
    %v1252 = vpack.c.bf16 %v1187, %v1185
    %v1253 = vpack.c.bf16 %v1192, %v1190
    %v1254 = vpack.c.bf16 %v1197, %v1195
    %v1255 = vpack.c.bf16 %v1202, %v1200
    %v1256 = vpack.c.bf16 %v1207, %v1205
    %v1257 = vpack.c.bf16 %v1212, %v1210
    %v1258 = vpack.c.bf16 %v1217, %v1215
    %v1259 = vpack.c.bf16 %v1222, %v1220
    %v1260 = vpack.c.bf16 %v1227, %v1225
    %v1261 = vld [vmem:[%s7] sm:$0xff]
    %v1262 = vld [vmem:[%s7 + $0x8] sm:$0xff]
    %v1263 = vld [vmem:[%s7 + $0x10] sm:$0xff]
    %v1264 = vld [vmem:[%s7 + $0x18] sm:$0xff]
    %v1265 = vld [vmem:[%s7 + $0x20] sm:$0xff]
    %v1266 = vld [vmem:[%s7 + $0x28] sm:$0xff]
    %v1267 = vld [vmem:[%s7 + $0x30] sm:$0xff]
    %v1268 = vld [vmem:[%s7 + $0x38] sm:$0xff]
    %v1269 = vld [vmem:[%s7 + $0x40] sm:$0xff]
    %v1270 = vld [vmem:[%s7 + $0x48] sm:$0xff]
    %v1271 = vld [vmem:[%s7 + $0x50] sm:$0xff]
    %v1272 = vld [vmem:[%s7 + $0x58] sm:$0xff]
    %v1273 = vld [vmem:[%s7 + $0x60] sm:$0xff]
    %v1274 = vld [vmem:[%s7 + $0x68] sm:$0xff]
    %v1275 = vld [vmem:[%s7 + $0x70] sm:$0xff]
    %v1276 = vld [vmem:[%s7 + $0x78] sm:$0xff]
    %v1277 = vld [vmem:[%s8] sm:$0x3]
    %v1279 = vperm.slane %v1277, 0
    %v1280 = vperm.slane %v1277, 1
    %v1299 = vunpack.c.l.b16 %v1261
    %v1300 = vunpack.c.h.b16 %v1261
    %v1301 = vunpack.c.l.b16 %v1262
    %v1302 = vunpack.c.h.b16 %v1262
    %v1303 = vunpack.c.l.b16 %v1263
    %v1304 = vunpack.c.h.b16 %v1263
    %v1305 = vunpack.c.l.b16 %v1264
    %v1306 = vunpack.c.h.b16 %v1264
    %v1307 = vunpack.c.l.b16 %v1265
    %v1308 = vunpack.c.h.b16 %v1265
    %v1309 = vunpack.c.l.b16 %v1266
    %v1310 = vunpack.c.h.b16 %v1266
    %v1311 = vunpack.c.l.b16 %v1267
    %v1312 = vunpack.c.h.b16 %v1267
    %v1313 = vunpack.c.l.b16 %v1268
    %v1314 = vunpack.c.h.b16 %v1268
    %v1315 = vunpack.c.l.b16 %v1269
    %v1316 = vunpack.c.h.b16 %v1269
    %v1317 = vunpack.c.l.b16 %v1270
    %v1318 = vunpack.c.h.b16 %v1270
    %v1319 = vunpack.c.l.b16 %v1271
    %v1320 = vunpack.c.h.b16 %v1271
    %v1321 = vunpack.c.l.b16 %v1272
    %v1322 = vunpack.c.h.b16 %v1272
    %v1323 = vunpack.c.l.b16 %v1273
    %v1324 = vunpack.c.h.b16 %v1273
    %v1325 = vunpack.c.l.b16 %v1274
    %v1326 = vunpack.c.h.b16 %v1274
    %v1327 = vunpack.c.l.b16 %v1275
    %v1328 = vunpack.c.h.b16 %v1275
    %v1329 = vunpack.c.l.b16 %v1276
    %v1330 = vunpack.c.h.b16 %v1276
    %v1331 = vpack.c.b16 %v1301, %v1299
    %v1332 = vpack.c.b16 %v1302, %v1300
    %v1333 = vpack.c.b16 %v1305, %v1303
    %v1334 = vpack.c.b16 %v1306, %v1304
    %v1335 = vpack.c.b16 %v1309, %v1307
    %v1336 = vpack.c.b16 %v1310, %v1308
    %v1337 = vpack.c.b16 %v1313, %v1311
    %v1338 = vpack.c.b16 %v1314, %v1312
    %v1339 = vpack.c.b16 %v1317, %v1315
    %v1340 = vpack.c.b16 %v1318, %v1316
    %v1341 = vpack.c.b16 %v1321, %v1319
    %v1342 = vpack.c.b16 %v1322, %v1320
    %v1343 = vpack.c.b16 %v1325, %v1323
    %v1344 = vpack.c.b16 %v1326, %v1324
    %v1345 = vpack.c.b16 %v1329, %v1327
    %v1346 = vpack.c.b16 %v1330, %v1328
    %1363 = vmatpush.bf16.msra.mxu0 %v1345
    %1364 = vmatpush.bf16.msra.mxu0 %v1343
    %1365 = vmatpush.bf16.msra.mxu0 %v1341
    %1366 = vmatpush.bf16.msra.mxu0 %v1339
    %1367 = vmatpush.bf16.msra.mxu0 %v1337
    %1368 = vmatpush.bf16.msra.mxu0 %v1335
    %1369 = vmatpush.bf16.msra.mxu0 %v1333
    %1370 = vmatpush.bf16.msra.mxu0 %v1331
    %1371 = vmatmul.bf16.gmra.mxu0 %v1229
    %v1372 = vpop.f32.mrf.mxu0
    %v1373 = vadd.f32 %v1279, %v1372
    %v1374 = vpop.f32.mrf.mxu0
    %v1375 = vadd.f32 %v1279, %v1374
    %1376 = vmatmul.bf16.gmra.mxu0 %v1230
    %v1377 = vpop.f32.mrf.mxu0
    %v1378 = vadd.f32 %v1279, %v1377
    %v1379 = vpop.f32.mrf.mxu0
    %v1380 = vadd.f32 %v1279, %v1379
    %1381 = vmatmul.bf16.gmra.mxu0 %v1231
    %v1382 = vpop.f32.mrf.mxu0
    %v1383 = vadd.f32 %v1279, %v1382
    %v1384 = vpop.f32.mrf.mxu0
    %v1385 = vadd.f32 %v1279, %v1384
    %1386 = vmatmul.bf16.gmra.mxu0 %v1232
    %v1387 = vpop.f32.mrf.mxu0
    %v1388 = vadd.f32 %v1279, %v1387
    %v1389 = vpop.f32.mrf.mxu0
    %v1390 = vadd.f32 %v1279, %v1389
    %1391 = vmatmul.bf16.gmra.mxu0 %v1233
    %v1392 = vpop.f32.mrf.mxu0
    %v1393 = vadd.f32 %v1279, %v1392
    %v1394 = vpop.f32.mrf.mxu0
    %v1395 = vadd.f32 %v1279, %v1394
    %1396 = vmatmul.bf16.gmra.mxu0 %v1234
    %v1397 = vpop.f32.mrf.mxu0
    %v1398 = vadd.f32 %v1279, %v1397
    %v1399 = vpop.f32.mrf.mxu0
    %v1400 = vadd.f32 %v1279, %v1399
    %1401 = vmatmul.bf16.gmra.mxu0 %v1235
    %v1402 = vpop.f32.mrf.mxu0
    %v1403 = vadd.f32 %v1279, %v1402
    %v1404 = vpop.f32.mrf.mxu0
    %v1405 = vadd.f32 %v1279, %v1404
    %1406 = vmatmul.bf16.gmra.mxu0 %v1236
    %v1407 = vpop.f32.mrf.mxu0
    %v1408 = vadd.f32 %v1279, %v1407
    %v1409 = vpop.f32.mrf.mxu0
    %v1410 = vadd.f32 %v1279, %v1409
    %1411 = vmatmul.bf16.gmra.mxu0 %v1237
    %v1412 = vpop.f32.mrf.mxu0
    %v1413 = vadd.f32 %v1279, %v1412
    %v1414 = vpop.f32.mrf.mxu0
    %v1415 = vadd.f32 %v1279, %v1414
    %1416 = vmatmul.bf16.gmra.mxu0 %v1238
    %v1417 = vpop.f32.mrf.mxu0
    %v1418 = vadd.f32 %v1279, %v1417
    %v1419 = vpop.f32.mrf.mxu0
    %v1420 = vadd.f32 %v1279, %v1419
    %1421 = vmatmul.bf16.gmra.mxu0 %v1239
    %v1422 = vpop.f32.mrf.mxu0
    %v1423 = vadd.f32 %v1279, %v1422
    %v1424 = vpop.f32.mrf.mxu0
    %v1425 = vadd.f32 %v1279, %v1424
    %1426 = vmatmul.bf16.gmra.mxu0 %v1240
    %v1427 = vpop.f32.mrf.mxu0
    %v1428 = vadd.f32 %v1279, %v1427
    %v1429 = vpop.f32.mrf.mxu0
    %v1430 = vadd.f32 %v1279, %v1429
    %1431 = vmatmul.bf16.gmra.mxu0 %v1241
    %v1432 = vpop.f32.mrf.mxu0
    %v1433 = vadd.f32 %v1279, %v1432
    %v1434 = vpop.f32.mrf.mxu0
    %v1435 = vadd.f32 %v1279, %v1434
    %1436 = vmatmul.bf16.gmra.mxu0 %v1242
    %v1437 = vpop.f32.mrf.mxu0
    %v1438 = vadd.f32 %v1279, %v1437
    %v1439 = vpop.f32.mrf.mxu0
    %v1440 = vadd.f32 %v1279, %v1439
    %1441 = vmatmul.bf16.gmra.mxu0 %v1243
    %v1442 = vpop.f32.mrf.mxu0
    %v1443 = vadd.f32 %v1279, %v1442
    %v1444 = vpop.f32.mrf.mxu0
    %v1445 = vadd.f32 %v1279, %v1444
    %1446 = vmatmul.bf16.gmra.mxu0 %v1244
    %v1447 = vpop.f32.mrf.mxu0
    %v1448 = vadd.f32 %v1279, %v1447
    %v1449 = vpop.f32.mrf.mxu0
    %v1450 = vadd.f32 %v1279, %v1449
    %1451 = vmatmul.bf16.gmra.mxu0 %v1245
    %v1452 = vpop.f32.mrf.mxu0
    %v1453 = vadd.f32 %v1279, %v1452
    %v1454 = vpop.f32.mrf.mxu0
    %v1455 = vadd.f32 %v1279, %v1454
    %1456 = vmatmul.bf16.gmra.mxu0 %v1246
    %v1457 = vpop.f32.mrf.mxu0
    %v1458 = vadd.f32 %v1279, %v1457
    %v1459 = vpop.f32.mrf.mxu0
    %v1460 = vadd.f32 %v1279, %v1459
    %1461 = vmatmul.bf16.gmra.mxu0 %v1247
    %v1462 = vpop.f32.mrf.mxu0
    %v1463 = vadd.f32 %v1279, %v1462
    %v1464 = vpop.f32.mrf.mxu0
    %v1465 = vadd.f32 %v1279, %v1464
    %1466 = vmatmul.bf16.gmra.mxu0 %v1248
    %v1467 = vpop.f32.mrf.mxu0
    %v1468 = vadd.f32 %v1279, %v1467
    %v1469 = vpop.f32.mrf.mxu0
    %v1470 = vadd.f32 %v1279, %v1469
    %1471 = vmatmul.bf16.gmra.mxu0 %v1249
    %v1472 = vpop.f32.mrf.mxu0
    %v1473 = vadd.f32 %v1279, %v1472
    %v1474 = vpop.f32.mrf.mxu0
    %v1475 = vadd.f32 %v1279, %v1474
    %1476 = vmatmul.bf16.gmra.mxu0 %v1250
    %v1477 = vpop.f32.mrf.mxu0
    %v1478 = vadd.f32 %v1279, %v1477
    %v1479 = vpop.f32.mrf.mxu0
    %v1480 = vadd.f32 %v1279, %v1479
    %1481 = vmatmul.bf16.gmra.mxu0 %v1251
    %v1482 = vpop.f32.mrf.mxu0
    %v1483 = vadd.f32 %v1279, %v1482
    %v1484 = vpop.f32.mrf.mxu0
    %v1485 = vadd.f32 %v1279, %v1484
    %1486 = vmatmul.bf16.gmra.mxu0 %v1252
    %v1487 = vpop.f32.mrf.mxu0
    %v1488 = vadd.f32 %v1279, %v1487
    %v1489 = vpop.f32.mrf.mxu0
    %v1490 = vadd.f32 %v1279, %v1489
    %1491 = vmatmul.bf16.gmra.mxu0 %v1253
    %v1492 = vpop.f32.mrf.mxu0
    %v1493 = vadd.f32 %v1279, %v1492
    %v1494 = vpop.f32.mrf.mxu0
    %v1495 = vadd.f32 %v1279, %v1494
    %1496 = vmatmul.bf16.gmra.mxu0 %v1254
    %v1497 = vpop.f32.mrf.mxu0
    %v1498 = vadd.f32 %v1279, %v1497
    %v1499 = vpop.f32.mrf.mxu0
    %v1500 = vadd.f32 %v1279, %v1499
    %1501 = vmatmul.bf16.gmra.mxu0 %v1255
    %v1502 = vpop.f32.mrf.mxu0
    %v1503 = vadd.f32 %v1279, %v1502
    %v1504 = vpop.f32.mrf.mxu0
    %v1505 = vadd.f32 %v1279, %v1504
    %1506 = vmatmul.bf16.gmra.mxu0 %v1256
    %v1507 = vpop.f32.mrf.mxu0
    %v1508 = vadd.f32 %v1279, %v1507
    %v1509 = vpop.f32.mrf.mxu0
    %v1510 = vadd.f32 %v1279, %v1509
    %1511 = vmatmul.bf16.gmra.mxu0 %v1257
    %v1512 = vpop.f32.mrf.mxu0
    %v1513 = vadd.f32 %v1279, %v1512
    %v1514 = vpop.f32.mrf.mxu0
    %v1515 = vadd.f32 %v1279, %v1514
    %1516 = vmatmul.bf16.gmra.mxu0 %v1258
    %v1517 = vpop.f32.mrf.mxu0
    %v1518 = vadd.f32 %v1279, %v1517
    %v1519 = vpop.f32.mrf.mxu0
    %v1520 = vadd.f32 %v1279, %v1519
    %1521 = vmatmul.bf16.gmra.mxu0 %v1259
    %v1522 = vpop.f32.mrf.mxu0
    %v1523 = vadd.f32 %v1279, %v1522
    %v1524 = vpop.f32.mrf.mxu0
    %v1525 = vadd.f32 %v1279, %v1524
    %1526 = vmatmul.bf16.gmra.mxu0 %v1260
    %v1527 = vpop.f32.mrf.mxu0
    %v1528 = vadd.f32 %v1279, %v1527
    %v1529 = vpop.f32.mrf.mxu0
    %v1530 = vadd.f32 %v1279, %v1529
    %1531 = vdwg.mxu0
    %1532 = vmatpush.bf16.msra.mxu0 %v1346
    %1533 = vmatpush.bf16.msra.mxu0 %v1344
    %1534 = vmatpush.bf16.msra.mxu0 %v1342
    %1535 = vmatpush.bf16.msra.mxu0 %v1340
    %1536 = vmatpush.bf16.msra.mxu0 %v1338
    %1537 = vmatpush.bf16.msra.mxu0 %v1336
    %1538 = vmatpush.bf16.msra.mxu0 %v1334
    %1539 = vmatpush.bf16.msra.mxu0 %v1332
    %1540 = vmatmul.bf16.gmra.mxu0 %v1229
    %v1541 = vpop.f32.mrf.mxu0
    %v1542 = vadd.f32 %v1280, %v1541
    %v1543 = vpop.f32.mrf.mxu0
    %v1544 = vadd.f32 %v1280, %v1543
    %1545 = vmatmul.bf16.gmra.mxu0 %v1230
    %v1546 = vpop.f32.mrf.mxu0
    %v1547 = vadd.f32 %v1280, %v1546
    %v1548 = vpop.f32.mrf.mxu0
    %v1549 = vadd.f32 %v1280, %v1548
    %1550 = vmatmul.bf16.gmra.mxu0 %v1231
    %v1551 = vpop.f32.mrf.mxu0
    %v1552 = vadd.f32 %v1280, %v1551
    %v1553 = vpop.f32.mrf.mxu0
    %v1554 = vadd.f32 %v1280, %v1553
    %1555 = vmatmul.bf16.gmra.mxu0 %v1232
    %v1556 = vpop.f32.mrf.mxu0
    %v1557 = vadd.f32 %v1280, %v1556
    %v1558 = vpop.f32.mrf.mxu0
    %v1559 = vadd.f32 %v1280, %v1558
    %1560 = vmatmul.bf16.gmra.mxu0 %v1233
    %v1561 = vpop.f32.mrf.mxu0
    %v1562 = vadd.f32 %v1280, %v1561
    %v1563 = vpop.f32.mrf.mxu0
    %v1564 = vadd.f32 %v1280, %v1563
    %1565 = vmatmul.bf16.gmra.mxu0 %v1234
    %v1566 = vpop.f32.mrf.mxu0
    %v1567 = vadd.f32 %v1280, %v1566
    %v1568 = vpop.f32.mrf.mxu0
    %v1569 = vadd.f32 %v1280, %v1568
    %1570 = vmatmul.bf16.gmra.mxu0 %v1235
    %v1571 = vpop.f32.mrf.mxu0
    %v1572 = vadd.f32 %v1280, %v1571
    %v1573 = vpop.f32.mrf.mxu0
    %v1574 = vadd.f32 %v1280, %v1573
    %1575 = vmatmul.bf16.gmra.mxu0 %v1236
    %v1576 = vpop.f32.mrf.mxu0
    %v1577 = vadd.f32 %v1280, %v1576
    %v1578 = vpop.f32.mrf.mxu0
    %v1579 = vadd.f32 %v1280, %v1578
    %1580 = vmatmul.bf16.gmra.mxu0 %v1237
    %v1581 = vpop.f32.mrf.mxu0
    %v1582 = vadd.f32 %v1280, %v1581
    %v1583 = vpop.f32.mrf.mxu0
    %v1584 = vadd.f32 %v1280, %v1583
    %1585 = vmatmul.bf16.gmra.mxu0 %v1238
    %v1586 = vpop.f32.mrf.mxu0
    %v1587 = vadd.f32 %v1280, %v1586
    %v1588 = vpop.f32.mrf.mxu0
    %v1589 = vadd.f32 %v1280, %v1588
    %1590 = vmatmul.bf16.gmra.mxu0 %v1239
    %v1591 = vpop.f32.mrf.mxu0
    %v1592 = vadd.f32 %v1280, %v1591
    %v1593 = vpop.f32.mrf.mxu0
    %v1594 = vadd.f32 %v1280, %v1593
    %1595 = vmatmul.bf16.gmra.mxu0 %v1240
    %v1596 = vpop.f32.mrf.mxu0
    %v1597 = vadd.f32 %v1280, %v1596
    %v1598 = vpop.f32.mrf.mxu0
    %v1599 = vadd.f32 %v1280, %v1598
    %1600 = vmatmul.bf16.gmra.mxu0 %v1241
    %v1601 = vpop.f32.mrf.mxu0
    %v1602 = vadd.f32 %v1280, %v1601
    %v1603 = vpop.f32.mrf.mxu0
    %v1604 = vadd.f32 %v1280, %v1603
    %1605 = vmatmul.bf16.gmra.mxu0 %v1242
    %v1606 = vpop.f32.mrf.mxu0
    %v1607 = vadd.f32 %v1280, %v1606
    %v1608 = vpop.f32.mrf.mxu0
    %v1609 = vadd.f32 %v1280, %v1608
    %1610 = vmatmul.bf16.gmra.mxu0 %v1243
    %v1611 = vpop.f32.mrf.mxu0
    %v1612 = vadd.f32 %v1280, %v1611
    %v1613 = vpop.f32.mrf.mxu0
    %v1614 = vadd.f32 %v1280, %v1613
    %1615 = vmatmul.bf16.gmra.mxu0 %v1244
    %v1616 = vpop.f32.mrf.mxu0
    %v1617 = vadd.f32 %v1280, %v1616
    %v1618 = vpop.f32.mrf.mxu0
    %v1619 = vadd.f32 %v1280, %v1618
    %1620 = vmatmul.bf16.gmra.mxu0 %v1245
    %v1621 = vpop.f32.mrf.mxu0
    %v1622 = vadd.f32 %v1280, %v1621
    %v1623 = vpop.f32.mrf.mxu0
    %v1624 = vadd.f32 %v1280, %v1623
    %1625 = vmatmul.bf16.gmra.mxu0 %v1246
    %v1626 = vpop.f32.mrf.mxu0
    %v1627 = vadd.f32 %v1280, %v1626
    %v1628 = vpop.f32.mrf.mxu0
    %v1629 = vadd.f32 %v1280, %v1628
    %1630 = vmatmul.bf16.gmra.mxu0 %v1247
    %v1631 = vpop.f32.mrf.mxu0
    %v1632 = vadd.f32 %v1280, %v1631
    %v1633 = vpop.f32.mrf.mxu0
    %v1634 = vadd.f32 %v1280, %v1633
    %1635 = vmatmul.bf16.gmra.mxu0 %v1248
    %v1636 = vpop.f32.mrf.mxu0
    %v1637 = vadd.f32 %v1280, %v1636
    %v1638 = vpop.f32.mrf.mxu0
    %v1639 = vadd.f32 %v1280, %v1638
    %1640 = vmatmul.bf16.gmra.mxu0 %v1249
    %v1641 = vpop.f32.mrf.mxu0
    %v1642 = vadd.f32 %v1280, %v1641
    %v1643 = vpop.f32.mrf.mxu0
    %v1644 = vadd.f32 %v1280, %v1643
    %1645 = vmatmul.bf16.gmra.mxu0 %v1250
    %v1646 = vpop.f32.mrf.mxu0
    %v1647 = vadd.f32 %v1280, %v1646
    %v1648 = vpop.f32.mrf.mxu0
    %v1649 = vadd.f32 %v1280, %v1648
    %1650 = vmatmul.bf16.gmra.mxu0 %v1251
    %v1651 = vpop.f32.mrf.mxu0
    %v1652 = vadd.f32 %v1280, %v1651
    %v1653 = vpop.f32.mrf.mxu0
    %v1654 = vadd.f32 %v1280, %v1653
    %1655 = vmatmul.bf16.gmra.mxu0 %v1252
    %v1656 = vpop.f32.mrf.mxu0
    %v1657 = vadd.f32 %v1280, %v1656
    %v1658 = vpop.f32.mrf.mxu0
    %v1659 = vadd.f32 %v1280, %v1658
    %1660 = vmatmul.bf16.gmra.mxu0 %v1253
    %v1661 = vpop.f32.mrf.mxu0
    %v1662 = vadd.f32 %v1280, %v1661
    %v1663 = vpop.f32.mrf.mxu0
    %v1664 = vadd.f32 %v1280, %v1663
    %1665 = vmatmul.bf16.gmra.mxu0 %v1254
    %v1666 = vpop.f32.mrf.mxu0
    %v1667 = vadd.f32 %v1280, %v1666
    %v1668 = vpop.f32.mrf.mxu0
    %v1669 = vadd.f32 %v1280, %v1668
    %1670 = vmatmul.bf16.gmra.mxu0 %v1255
    %v1671 = vpop.f32.mrf.mxu0
    %v1672 = vadd.f32 %v1280, %v1671
    %v1673 = vpop.f32.mrf.mxu0
    %v1674 = vadd.f32 %v1280, %v1673
    %1675 = vmatmul.bf16.gmra.mxu0 %v1256
    %v1676 = vpop.f32.mrf.mxu0
    %v1677 = vadd.f32 %v1280, %v1676
    %v1678 = vpop.f32.mrf.mxu0
    %v1679 = vadd.f32 %v1280, %v1678
    %1680 = vmatmul.bf16.gmra.mxu0 %v1257
    %v1681 = vpop.f32.mrf.mxu0
    %v1682 = vadd.f32 %v1280, %v1681
    %v1683 = vpop.f32.mrf.mxu0
    %v1684 = vadd.f32 %v1280, %v1683
    %1685 = vmatmul.bf16.gmra.mxu0 %v1258
    %v1686 = vpop.f32.mrf.mxu0
    %v1687 = vadd.f32 %v1280, %v1686
    %v1688 = vpop.f32.mrf.mxu0
    %v1689 = vadd.f32 %v1280, %v1688
    %1690 = vmatmul.bf16.gmra.mxu0 %v1259
    %v1691 = vpop.f32.mrf.mxu0
    %v1692 = vadd.f32 %v1280, %v1691
    %v1693 = vpop.f32.mrf.mxu0
    %v1694 = vadd.f32 %v1280, %v1693
    %1695 = vmatmul.bf16.gmra.mxu0 %v1260
    %v1696 = vpop.f32.mrf.mxu0
    %v1697 = vadd.f32 %v1280, %v1696
    %v1698 = vpop.f32.mrf.mxu0
    %v1699 = vadd.f32 %v1280, %v1698
    %1700 = vdwg.mxu0
    %v1701 = vpack.c.bf16 %v1375, %v1373
    %v1702 = vpack.c.bf16 %v1544, %v1542
    %v1703 = vpack.c.bf16 %v1380, %v1378
    %v1704 = vpack.c.bf16 %v1549, %v1547
    %v1705 = vpack.c.bf16 %v1385, %v1383
    %v1706 = vpack.c.bf16 %v1554, %v1552
    %v1707 = vpack.c.bf16 %v1390, %v1388
    %v1708 = vpack.c.bf16 %v1559, %v1557
    %v1709 = vpack.c.bf16 %v1395, %v1393
    %v1710 = vpack.c.bf16 %v1564, %v1562
    %v1711 = vpack.c.bf16 %v1400, %v1398
    %v1712 = vpack.c.bf16 %v1569, %v1567
    %v1713 = vpack.c.bf16 %v1405, %v1403
    %v1714 = vpack.c.bf16 %v1574, %v1572
    %v1715 = vpack.c.bf16 %v1410, %v1408
    %v1716 = vpack.c.bf16 %v1579, %v1577
    %v1717 = vpack.c.bf16 %v1415, %v1413
    %v1718 = vpack.c.bf16 %v1584, %v1582
    %v1719 = vpack.c.bf16 %v1420, %v1418
    %v1720 = vpack.c.bf16 %v1589, %v1587
    %v1721 = vpack.c.bf16 %v1425, %v1423
    %v1722 = vpack.c.bf16 %v1594, %v1592
    %v1723 = vpack.c.bf16 %v1430, %v1428
    %v1724 = vpack.c.bf16 %v1599, %v1597
    %v1725 = vpack.c.bf16 %v1435, %v1433
    %v1726 = vpack.c.bf16 %v1604, %v1602
    %v1727 = vpack.c.bf16 %v1440, %v1438
    %v1728 = vpack.c.bf16 %v1609, %v1607
    %v1729 = vpack.c.bf16 %v1445, %v1443
    %v1730 = vpack.c.bf16 %v1614, %v1612
    %v1731 = vpack.c.bf16 %v1450, %v1448
    %v1732 = vpack.c.bf16 %v1619, %v1617
    %v1733 = vpack.c.bf16 %v1455, %v1453
    %v1734 = vpack.c.bf16 %v1624, %v1622
    %v1735 = vpack.c.bf16 %v1460, %v1458
    %v1736 = vpack.c.bf16 %v1629, %v1627
    %v1737 = vpack.c.bf16 %v1465, %v1463
    %v1738 = vpack.c.bf16 %v1634, %v1632
    %v1739 = vpack.c.bf16 %v1470, %v1468
    %v1740 = vpack.c.bf16 %v1639, %v1637
    %v1741 = vpack.c.bf16 %v1475, %v1473
    %v1742 = vpack.c.bf16 %v1644, %v1642
    %v1743 = vpack.c.bf16 %v1480, %v1478
    %v1744 = vpack.c.bf16 %v1649, %v1647
    %v1745 = vpack.c.bf16 %v1485, %v1483
    %v1746 = vpack.c.bf16 %v1654, %v1652
    %v1747 = vpack.c.bf16 %v1490, %v1488
    %v1748 = vpack.c.bf16 %v1659, %v1657
    %v1749 = vpack.c.bf16 %v1495, %v1493
    %v1750 = vpack.c.bf16 %v1664, %v1662
    %v1751 = vpack.c.bf16 %v1500, %v1498
    %v1752 = vpack.c.bf16 %v1669, %v1667
    %v1753 = vpack.c.bf16 %v1505, %v1503
    %v1754 = vpack.c.bf16 %v1674, %v1672
    %v1755 = vpack.c.bf16 %v1510, %v1508
    %v1756 = vpack.c.bf16 %v1679, %v1677
    %v1757 = vpack.c.bf16 %v1515, %v1513
    %v1758 = vpack.c.bf16 %v1684, %v1682
    %v1759 = vpack.c.bf16 %v1520, %v1518
    %v1760 = vpack.c.bf16 %v1689, %v1687
    %v1761 = vpack.c.bf16 %v1525, %v1523
    %v1762 = vpack.c.bf16 %v1694, %v1692
    %v1763 = vpack.c.bf16 %v1530, %v1528
    %v1764 = vpack.c.bf16 %v1699, %v1697
    %v1765 = vld [vmem:[%s9] sm:$0xf]
    %v1766 = vld [vmem:[%s9 + $0x4] sm:$0xf]
    %v1767 = vld [vmem:[%s9 + $0x8] sm:$0xf]
    %v1768 = vld [vmem:[%s9 + $0xc] sm:$0xf]
    %v1769 = vld [vmem:[%s9 + $0x10] sm:$0xf]
    %v1770 = vld [vmem:[%s9 + $0x14] sm:$0xf]
    %v1771 = vld [vmem:[%s9 + $0x18] sm:$0xf]
    %v1772 = vld [vmem:[%s9 + $0x1c] sm:$0xf]
    %v1773 = vld [vmem:[%s9 + $0x20] sm:$0xf]
    %v1774 = vld [vmem:[%s9 + $0x24] sm:$0xf]
    %v1775 = vld [vmem:[%s9 + $0x28] sm:$0xf]
    %v1776 = vld [vmem:[%s9 + $0x2c] sm:$0xf]
    %v1777 = vld [vmem:[%s9 + $0x30] sm:$0xf]
    %v1778 = vld [vmem:[%s9 + $0x34] sm:$0xf]
    %v1779 = vld [vmem:[%s9 + $0x38] sm:$0xf]
    %v1780 = vld [vmem:[%s9 + $0x3c] sm:$0xf]
    %v1781 = vld [vmem:[%s9 + $0x40] sm:$0xf]
    %v1782 = vld [vmem:[%s9 + $0x44] sm:$0xf]
    %v1783 = vld [vmem:[%s9 + $0x48] sm:$0xf]
    %v1784 = vld [vmem:[%s9 + $0x4c] sm:$0xf]
    %v1785 = vld [vmem:[%s9 + $0x50] sm:$0xf]
    %v1786 = vld [vmem:[%s9 + $0x54] sm:$0xf]
    %v1787 = vld [vmem:[%s9 + $0x58] sm:$0xf]
    %v1788 = vld [vmem:[%s9 + $0x5c] sm:$0xf]
    %v1789 = vld [vmem:[%s9 + $0x60] sm:$0xf]
    %v1790 = vld [vmem:[%s9 + $0x64] sm:$0xf]
    %v1791 = vld [vmem:[%s9 + $0x68] sm:$0xf]
    %v1792 = vld [vmem:[%s9 + $0x6c] sm:$0xf]
    %v1793 = vld [vmem:[%s9 + $0x70] sm:$0xf]
    %v1794 = vld [vmem:[%s9 + $0x74] sm:$0xf]
    %v1795 = vld [vmem:[%s9 + $0x78] sm:$0xf]
    %v1796 = vld [vmem:[%s9 + $0x7c] sm:$0xf]
    %v1797 = vld [vmem:[%s10] sm:$0x1]
    %v1799 = vperm.slane %v1797, 0
    %v1833 = vunpack.c.l.b16 %v1765
    %v1834 = vunpack.c.l.b16 %v1766
    %v1835 = vunpack.c.l.b16 %v1767
    %v1836 = vunpack.c.l.b16 %v1768
    %v1837 = vunpack.c.l.b16 %v1769
    %v1838 = vunpack.c.l.b16 %v1770
    %v1839 = vunpack.c.l.b16 %v1771
    %v1840 = vunpack.c.l.b16 %v1772
    %v1841 = vunpack.c.l.b16 %v1773
    %v1842 = vunpack.c.l.b16 %v1774
    %v1843 = vunpack.c.l.b16 %v1775
    %v1844 = vunpack.c.l.b16 %v1776
    %v1845 = vunpack.c.l.b16 %v1777
    %v1846 = vunpack.c.l.b16 %v1778
    %v1847 = vunpack.c.l.b16 %v1779
    %v1848 = vunpack.c.l.b16 %v1780
    %v1849 = vunpack.c.l.b16 %v1781
    %v1850 = vunpack.c.l.b16 %v1782
    %v1851 = vunpack.c.l.b16 %v1783
    %v1852 = vunpack.c.l.b16 %v1784
    %v1853 = vunpack.c.l.b16 %v1785
    %v1854 = vunpack.c.l.b16 %v1786
    %v1855 = vunpack.c.l.b16 %v1787
    %v1856 = vunpack.c.l.b16 %v1788
    %v1857 = vunpack.c.l.b16 %v1789
    %v1858 = vunpack.c.l.b16 %v1790
    %v1859 = vunpack.c.l.b16 %v1791
    %v1860 = vunpack.c.l.b16 %v1792
    %v1861 = vunpack.c.l.b16 %v1793
    %v1862 = vunpack.c.l.b16 %v1794
    %v1863 = vunpack.c.l.b16 %v1795
    %v1864 = vunpack.c.l.b16 %v1796
    %v1865 = vpack.c.b16 %v1834, %v1833
    %v1866 = vpack.c.b16 %v1836, %v1835
    %v1867 = vpack.c.b16 %v1838, %v1837
    %v1868 = vpack.c.b16 %v1840, %v1839
    %v1869 = vpack.c.b16 %v1842, %v1841
    %v1870 = vpack.c.b16 %v1844, %v1843
    %v1871 = vpack.c.b16 %v1846, %v1845
    %v1872 = vpack.c.b16 %v1848, %v1847
    %v1873 = vpack.c.b16 %v1850, %v1849
    %v1874 = vpack.c.b16 %v1852, %v1851
    %v1875 = vpack.c.b16 %v1854, %v1853
    %v1876 = vpack.c.b16 %v1856, %v1855
    %v1877 = vpack.c.b16 %v1858, %v1857
    %v1878 = vpack.c.b16 %v1860, %v1859
    %v1879 = vpack.c.b16 %v1862, %v1861
    %v1880 = vpack.c.b16 %v1864, %v1863
    %1897 = vmatpush.bf16.msra.mxu0 %v1872
    %1898 = vmatpush.bf16.msra.mxu0 %v1871
    %1899 = vmatpush.bf16.msra.mxu0 %v1870
    %1900 = vmatpush.bf16.msra.mxu0 %v1869
    %1901 = vmatpush.bf16.msra.mxu0 %v1868
    %1902 = vmatpush.bf16.msra.mxu0 %v1867
    %1903 = vmatpush.bf16.msra.mxu0 %v1866
    %1904 = vmatpush.bf16.msra.mxu0 %v1865
    %1905 = vmatmul.bf16.gmra.mxu0 %v1701
    %v1906 = vpop.f32.mrf.mxu0
    %v1907 = vadd.f32 %v1799, %v1906
    %v1908 = vpop.f32.mrf.mxu0
    %v1909 = vadd.f32 %v1799, %v1908
    %1910 = vmatmul.bf16.gmra.mxu0 %v1703
    %v1911 = vpop.f32.mrf.mxu0
    %v1912 = vadd.f32 %v1799, %v1911
    %v1913 = vpop.f32.mrf.mxu0
    %v1914 = vadd.f32 %v1799, %v1913
    %1915 = vmatmul.bf16.gmra.mxu0 %v1705
    %v1916 = vpop.f32.mrf.mxu0
    %v1917 = vadd.f32 %v1799, %v1916
    %v1918 = vpop.f32.mrf.mxu0
    %v1919 = vadd.f32 %v1799, %v1918
    %1920 = vmatmul.bf16.gmra.mxu0 %v1707
    %v1921 = vpop.f32.mrf.mxu0
    %v1922 = vadd.f32 %v1799, %v1921
    %v1923 = vpop.f32.mrf.mxu0
    %v1924 = vadd.f32 %v1799, %v1923
    %1925 = vmatmul.bf16.gmra.mxu0 %v1709
    %v1926 = vpop.f32.mrf.mxu0
    %v1927 = vadd.f32 %v1799, %v1926
    %v1928 = vpop.f32.mrf.mxu0
    %v1929 = vadd.f32 %v1799, %v1928
    %1930 = vmatmul.bf16.gmra.mxu0 %v1711
    %v1931 = vpop.f32.mrf.mxu0
    %v1932 = vadd.f32 %v1799, %v1931
    %v1933 = vpop.f32.mrf.mxu0
    %v1934 = vadd.f32 %v1799, %v1933
    %1935 = vmatmul.bf16.gmra.mxu0 %v1713
    %v1936 = vpop.f32.mrf.mxu0
    %v1937 = vadd.f32 %v1799, %v1936
    %v1938 = vpop.f32.mrf.mxu0
    %v1939 = vadd.f32 %v1799, %v1938
    %1940 = vmatmul.bf16.gmra.mxu0 %v1715
    %v1941 = vpop.f32.mrf.mxu0
    %v1942 = vadd.f32 %v1799, %v1941
    %v1943 = vpop.f32.mrf.mxu0
    %v1944 = vadd.f32 %v1799, %v1943
    %1945 = vmatmul.bf16.gmra.mxu0 %v1717
    %v1946 = vpop.f32.mrf.mxu0
    %v1947 = vadd.f32 %v1799, %v1946
    %v1948 = vpop.f32.mrf.mxu0
    %v1949 = vadd.f32 %v1799, %v1948
    %1950 = vmatmul.bf16.gmra.mxu0 %v1719
    %v1951 = vpop.f32.mrf.mxu0
    %v1952 = vadd.f32 %v1799, %v1951
    %v1953 = vpop.f32.mrf.mxu0
    %v1954 = vadd.f32 %v1799, %v1953
    %1955 = vmatmul.bf16.gmra.mxu0 %v1721
    %v1956 = vpop.f32.mrf.mxu0
    %v1957 = vadd.f32 %v1799, %v1956
    %v1958 = vpop.f32.mrf.mxu0
    %v1959 = vadd.f32 %v1799, %v1958
    %1960 = vmatmul.bf16.gmra.mxu0 %v1723
    %v1961 = vpop.f32.mrf.mxu0
    %v1962 = vadd.f32 %v1799, %v1961
    %v1963 = vpop.f32.mrf.mxu0
    %v1964 = vadd.f32 %v1799, %v1963
    %1965 = vmatmul.bf16.gmra.mxu0 %v1725
    %v1966 = vpop.f32.mrf.mxu0
    %v1967 = vadd.f32 %v1799, %v1966
    %v1968 = vpop.f32.mrf.mxu0
    %v1969 = vadd.f32 %v1799, %v1968
    %1970 = vmatmul.bf16.gmra.mxu0 %v1727
    %v1971 = vpop.f32.mrf.mxu0
    %v1972 = vadd.f32 %v1799, %v1971
    %v1973 = vpop.f32.mrf.mxu0
    %v1974 = vadd.f32 %v1799, %v1973
    %1975 = vmatmul.bf16.gmra.mxu0 %v1729
    %v1976 = vpop.f32.mrf.mxu0
    %v1977 = vadd.f32 %v1799, %v1976
    %v1978 = vpop.f32.mrf.mxu0
    %v1979 = vadd.f32 %v1799, %v1978
    %1980 = vmatmul.bf16.gmra.mxu0 %v1731
    %v1981 = vpop.f32.mrf.mxu0
    %v1982 = vadd.f32 %v1799, %v1981
    %v1983 = vpop.f32.mrf.mxu0
    %v1984 = vadd.f32 %v1799, %v1983
    %1985 = vmatmul.bf16.gmra.mxu0 %v1733
    %v1986 = vpop.f32.mrf.mxu0
    %v1987 = vadd.f32 %v1799, %v1986
    %v1988 = vpop.f32.mrf.mxu0
    %v1989 = vadd.f32 %v1799, %v1988
    %1990 = vmatmul.bf16.gmra.mxu0 %v1735
    %v1991 = vpop.f32.mrf.mxu0
    %v1992 = vadd.f32 %v1799, %v1991
    %v1993 = vpop.f32.mrf.mxu0
    %v1994 = vadd.f32 %v1799, %v1993
    %1995 = vmatmul.bf16.gmra.mxu0 %v1737
    %v1996 = vpop.f32.mrf.mxu0
    %v1997 = vadd.f32 %v1799, %v1996
    %v1998 = vpop.f32.mrf.mxu0
    %v1999 = vadd.f32 %v1799, %v1998
    %2000 = vmatmul.bf16.gmra.mxu0 %v1739
    %v2001 = vpop.f32.mrf.mxu0
    %v2002 = vadd.f32 %v1799, %v2001
    %v2003 = vpop.f32.mrf.mxu0
    %v2004 = vadd.f32 %v1799, %v2003
    %2005 = vmatmul.bf16.gmra.mxu0 %v1741
    %v2006 = vpop.f32.mrf.mxu0
    %v2007 = vadd.f32 %v1799, %v2006
    %v2008 = vpop.f32.mrf.mxu0
    %v2009 = vadd.f32 %v1799, %v2008
    %2010 = vmatmul.bf16.gmra.mxu0 %v1743
    %v2011 = vpop.f32.mrf.mxu0
    %v2012 = vadd.f32 %v1799, %v2011
    %v2013 = vpop.f32.mrf.mxu0
    %v2014 = vadd.f32 %v1799, %v2013
    %2015 = vmatmul.bf16.gmra.mxu0 %v1745
    %v2016 = vpop.f32.mrf.mxu0
    %v2017 = vadd.f32 %v1799, %v2016
    %v2018 = vpop.f32.mrf.mxu0
    %v2019 = vadd.f32 %v1799, %v2018
    %2020 = vmatmul.bf16.gmra.mxu0 %v1747
    %v2021 = vpop.f32.mrf.mxu0
    %v2022 = vadd.f32 %v1799, %v2021
    %v2023 = vpop.f32.mrf.mxu0
    %v2024 = vadd.f32 %v1799, %v2023
    %2025 = vmatmul.bf16.gmra.mxu0 %v1749
    %v2026 = vpop.f32.mrf.mxu0
    %v2027 = vadd.f32 %v1799, %v2026
    %v2028 = vpop.f32.mrf.mxu0
    %v2029 = vadd.f32 %v1799, %v2028
    %2030 = vmatmul.bf16.gmra.mxu0 %v1751
    %v2031 = vpop.f32.mrf.mxu0
    %v2032 = vadd.f32 %v1799, %v2031
    %v2033 = vpop.f32.mrf.mxu0
    %v2034 = vadd.f32 %v1799, %v2033
    %2035 = vmatmul.bf16.gmra.mxu0 %v1753
    %v2036 = vpop.f32.mrf.mxu0
    %v2037 = vadd.f32 %v1799, %v2036
    %v2038 = vpop.f32.mrf.mxu0
    %v2039 = vadd.f32 %v1799, %v2038
    %2040 = vmatmul.bf16.gmra.mxu0 %v1755
    %v2041 = vpop.f32.mrf.mxu0
    %v2042 = vadd.f32 %v1799, %v2041
    %v2043 = vpop.f32.mrf.mxu0
    %v2044 = vadd.f32 %v1799, %v2043
    %2045 = vmatmul.bf16.gmra.mxu0 %v1757
    %v2046 = vpop.f32.mrf.mxu0
    %v2047 = vadd.f32 %v1799, %v2046
    %v2048 = vpop.f32.mrf.mxu0
    %v2049 = vadd.f32 %v1799, %v2048
    %2050 = vmatmul.bf16.gmra.mxu0 %v1759
    %v2051 = vpop.f32.mrf.mxu0
    %v2052 = vadd.f32 %v1799, %v2051
    %v2053 = vpop.f32.mrf.mxu0
    %v2054 = vadd.f32 %v1799, %v2053
    %2055 = vmatmul.bf16.gmra.mxu0 %v1761
    %v2056 = vpop.f32.mrf.mxu0
    %v2057 = vadd.f32 %v1799, %v2056
    %v2058 = vpop.f32.mrf.mxu0
    %v2059 = vadd.f32 %v1799, %v2058
    %2060 = vmatmul.bf16.gmra.mxu0 %v1763
    %v2061 = vpop.f32.mrf.mxu0
    %v2062 = vadd.f32 %v1799, %v2061
    %v2063 = vpop.f32.mrf.mxu0
    %v2064 = vadd.f32 %v1799, %v2063
    %2065 = vdwg.mxu0
    %2066 = vmatpush.bf16.msra.mxu0 %v1880
    %2067 = vmatpush.bf16.msra.mxu0 %v1879
    %2068 = vmatpush.bf16.msra.mxu0 %v1878
    %2069 = vmatpush.bf16.msra.mxu0 %v1877
    %2070 = vmatpush.bf16.msra.mxu0 %v1876
    %2071 = vmatpush.bf16.msra.mxu0 %v1875
    %2072 = vmatpush.bf16.msra.mxu0 %v1874
    %2073 = vmatpush.bf16.msra.mxu0 %v1873
    %2074 = vmatmul.bf16.gmra.mxu0 %v1702
    %v2075 = vpop.f32.mrf.mxu0
    %v2076 = vadd.f32 %v1907, %v2075
    %v2077 = vpop.f32.mrf.mxu0
    %v2078 = vadd.f32 %v1909, %v2077
    %2079 = vmatmul.bf16.gmra.mxu0 %v1704
    %v2080 = vpop.f32.mrf.mxu0
    %v2081 = vadd.f32 %v1912, %v2080
    %v2082 = vpop.f32.mrf.mxu0
    %v2083 = vadd.f32 %v1914, %v2082
    %2084 = vmatmul.bf16.gmra.mxu0 %v1706
    %v2085 = vpop.f32.mrf.mxu0
    %v2086 = vadd.f32 %v1917, %v2085
    %v2087 = vpop.f32.mrf.mxu0
    %v2088 = vadd.f32 %v1919, %v2087
    %2089 = vmatmul.bf16.gmra.mxu0 %v1708
    %v2090 = vpop.f32.mrf.mxu0
    %v2091 = vadd.f32 %v1922, %v2090
    %v2092 = vpop.f32.mrf.mxu0
    %v2093 = vadd.f32 %v1924, %v2092
    %2094 = vmatmul.bf16.gmra.mxu0 %v1710
    %v2095 = vpop.f32.mrf.mxu0
    %v2096 = vadd.f32 %v1927, %v2095
    %v2097 = vpop.f32.mrf.mxu0
    %v2098 = vadd.f32 %v1929, %v2097
    %2099 = vmatmul.bf16.gmra.mxu0 %v1712
    %v2100 = vpop.f32.mrf.mxu0
    %v2101 = vadd.f32 %v1932, %v2100
    %v2102 = vpop.f32.mrf.mxu0
    %v2103 = vadd.f32 %v1934, %v2102
    %2104 = vmatmul.bf16.gmra.mxu0 %v1714
    %v2105 = vpop.f32.mrf.mxu0
    %v2106 = vadd.f32 %v1937, %v2105
    %v2107 = vpop.f32.mrf.mxu0
    %v2108 = vadd.f32 %v1939, %v2107
    %2109 = vmatmul.bf16.gmra.mxu0 %v1716
    %v2110 = vpop.f32.mrf.mxu0
    %v2111 = vadd.f32 %v1942, %v2110
    %v2112 = vpop.f32.mrf.mxu0
    %v2113 = vadd.f32 %v1944, %v2112
    %2114 = vmatmul.bf16.gmra.mxu0 %v1718
    %v2115 = vpop.f32.mrf.mxu0
    %v2116 = vadd.f32 %v1947, %v2115
    %v2117 = vpop.f32.mrf.mxu0
    %v2118 = vadd.f32 %v1949, %v2117
    %2119 = vmatmul.bf16.gmra.mxu0 %v1720
    %v2120 = vpop.f32.mrf.mxu0
    %v2121 = vadd.f32 %v1952, %v2120
    %v2122 = vpop.f32.mrf.mxu0
    %v2123 = vadd.f32 %v1954, %v2122
    %2124 = vmatmul.bf16.gmra.mxu0 %v1722
    %v2125 = vpop.f32.mrf.mxu0
    %v2126 = vadd.f32 %v1957, %v2125
    %v2127 = vpop.f32.mrf.mxu0
    %v2128 = vadd.f32 %v1959, %v2127
    %2129 = vmatmul.bf16.gmra.mxu0 %v1724
    %v2130 = vpop.f32.mrf.mxu0
    %v2131 = vadd.f32 %v1962, %v2130
    %v2132 = vpop.f32.mrf.mxu0
    %v2133 = vadd.f32 %v1964, %v2132
    %2134 = vmatmul.bf16.gmra.mxu0 %v1726
    %v2135 = vpop.f32.mrf.mxu0
    %v2136 = vadd.f32 %v1967, %v2135
    %v2137 = vpop.f32.mrf.mxu0
    %v2138 = vadd.f32 %v1969, %v2137
    %2139 = vmatmul.bf16.gmra.mxu0 %v1728
    %v2140 = vpop.f32.mrf.mxu0
    %v2141 = vadd.f32 %v1972, %v2140
    %v2142 = vpop.f32.mrf.mxu0
    %v2143 = vadd.f32 %v1974, %v2142
    %2144 = vmatmul.bf16.gmra.mxu0 %v1730
    %v2145 = vpop.f32.mrf.mxu0
    %v2146 = vadd.f32 %v1977, %v2145
    %v2147 = vpop.f32.mrf.mxu0
    %v2148 = vadd.f32 %v1979, %v2147
    %2149 = vmatmul.bf16.gmra.mxu0 %v1732
    %v2150 = vpop.f32.mrf.mxu0
    %v2151 = vadd.f32 %v1982, %v2150
    %v2152 = vpop.f32.mrf.mxu0
    %v2153 = vadd.f32 %v1984, %v2152
    %2154 = vmatmul.bf16.gmra.mxu0 %v1734
    %v2155 = vpop.f32.mrf.mxu0
    %v2156 = vadd.f32 %v1987, %v2155
    %v2157 = vpop.f32.mrf.mxu0
    %v2158 = vadd.f32 %v1989, %v2157
    %2159 = vmatmul.bf16.gmra.mxu0 %v1736
    %v2160 = vpop.f32.mrf.mxu0
    %v2161 = vadd.f32 %v1992, %v2160
    %v2162 = vpop.f32.mrf.mxu0
    %v2163 = vadd.f32 %v1994, %v2162
    %2164 = vmatmul.bf16.gmra.mxu0 %v1738
    %v2165 = vpop.f32.mrf.mxu0
    %v2166 = vadd.f32 %v1997, %v2165
    %v2167 = vpop.f32.mrf.mxu0
    %v2168 = vadd.f32 %v1999, %v2167
    %2169 = vmatmul.bf16.gmra.mxu0 %v1740
    %v2170 = vpop.f32.mrf.mxu0
    %v2171 = vadd.f32 %v2002, %v2170
    %v2172 = vpop.f32.mrf.mxu0
    %v2173 = vadd.f32 %v2004, %v2172
    %2174 = vmatmul.bf16.gmra.mxu0 %v1742
    %v2175 = vpop.f32.mrf.mxu0
    %v2176 = vadd.f32 %v2007, %v2175
    %v2177 = vpop.f32.mrf.mxu0
    %v2178 = vadd.f32 %v2009, %v2177
    %2179 = vmatmul.bf16.gmra.mxu0 %v1744
    %v2180 = vpop.f32.mrf.mxu0
    %v2181 = vadd.f32 %v2012, %v2180
    %v2182 = vpop.f32.mrf.mxu0
    %v2183 = vadd.f32 %v2014, %v2182
    %2184 = vmatmul.bf16.gmra.mxu0 %v1746
    %v2185 = vpop.f32.mrf.mxu0
    %v2186 = vadd.f32 %v2017, %v2185
    %v2187 = vpop.f32.mrf.mxu0
    %v2188 = vadd.f32 %v2019, %v2187
    %2189 = vmatmul.bf16.gmra.mxu0 %v1748
    %v2190 = vpop.f32.mrf.mxu0
    %v2191 = vadd.f32 %v2022, %v2190
    %v2192 = vpop.f32.mrf.mxu0
    %v2193 = vadd.f32 %v2024, %v2192
    %2194 = vmatmul.bf16.gmra.mxu0 %v1750
    %v2195 = vpop.f32.mrf.mxu0
    %v2196 = vadd.f32 %v2027, %v2195
    %v2197 = vpop.f32.mrf.mxu0
    %v2198 = vadd.f32 %v2029, %v2197
    %2199 = vmatmul.bf16.gmra.mxu0 %v1752
    %v2200 = vpop.f32.mrf.mxu0
    %v2201 = vadd.f32 %v2032, %v2200
    %v2202 = vpop.f32.mrf.mxu0
    %v2203 = vadd.f32 %v2034, %v2202
    %2204 = vmatmul.bf16.gmra.mxu0 %v1754
    %v2205 = vpop.f32.mrf.mxu0
    %v2206 = vadd.f32 %v2037, %v2205
    %v2207 = vpop.f32.mrf.mxu0
    %v2208 = vadd.f32 %v2039, %v2207
    %2209 = vmatmul.bf16.gmra.mxu0 %v1756
    %v2210 = vpop.f32.mrf.mxu0
    %v2211 = vadd.f32 %v2042, %v2210
    %v2212 = vpop.f32.mrf.mxu0
    %v2213 = vadd.f32 %v2044, %v2212
    %2214 = vmatmul.bf16.gmra.mxu0 %v1758
    %v2215 = vpop.f32.mrf.mxu0
    %v2216 = vadd.f32 %v2047, %v2215
    %v2217 = vpop.f32.mrf.mxu0
    %v2218 = vadd.f32 %v2049, %v2217
    %2219 = vmatmul.bf16.gmra.mxu0 %v1760
    %v2220 = vpop.f32.mrf.mxu0
    %v2221 = vadd.f32 %v2052, %v2220
    %v2222 = vpop.f32.mrf.mxu0
    %v2223 = vadd.f32 %v2054, %v2222
    %2224 = vmatmul.bf16.gmra.mxu0 %v1762
    %v2225 = vpop.f32.mrf.mxu0
    %v2226 = vadd.f32 %v2057, %v2225
    %v2227 = vpop.f32.mrf.mxu0
    %v2228 = vadd.f32 %v2059, %v2227
    %2229 = vmatmul.bf16.gmra.mxu0 %v1764
    %v2230 = vpop.f32.mrf.mxu0
    %v2231 = vadd.f32 %v2062, %v2230
    %v2232 = vpop.f32.mrf.mxu0
    %v2233 = vadd.f32 %v2064, %v2232
    %2234 = vdwg.mxu0
    %2235 = vst [vmem:[#allocation7] sm:$0xff] %v2076
    %2236 = vst [vmem:[#allocation7 + $0x8] sm:$0xff] %v2078
    %2237 = vst [vmem:[#allocation7 + $0x10] sm:$0xff] %v2081
    %2238 = vst [vmem:[#allocation7 + $0x18] sm:$0xff] %v2083
    %2239 = vst [vmem:[#allocation7 + $0x20] sm:$0xff] %v2086
    %2240 = vst [vmem:[#allocation7 + $0x28] sm:$0xff] %v2088
    %2241 = vst [vmem:[#allocation7 + $0x30] sm:$0xff] %v2091
    %2242 = vst [vmem:[#allocation7 + $0x38] sm:$0xff] %v2093
    %2243 = vst [vmem:[#allocation7 + $0x40] sm:$0xff] %v2096
    %2244 = vst [vmem:[#allocation7 + $0x48] sm:$0xff] %v2098
    %2245 = vst [vmem:[#allocation7 + $0x50] sm:$0xff] %v2101
    %2246 = vst [vmem:[#allocation7 + $0x58] sm:$0xff] %v2103
    %2247 = vst [vmem:[#allocation7 + $0x60] sm:$0xff] %v2106
    %2248 = vst [vmem:[#allocation7 + $0x68] sm:$0xff] %v2108
    %2249 = vst [vmem:[#allocation7 + $0x70] sm:$0xff] %v2111
    %2250 = vst [vmem:[#allocation7 + $0x78] sm:$0xff] %v2113
    %2251 = vst [vmem:[#allocation7 + $0x80] sm:$0xff] %v2116
    %2252 = vst [vmem:[#allocation7 + $0x88] sm:$0xff] %v2118
    %2253 = vst [vmem:[#allocation7 + $0x90] sm:$0xff] %v2121
    %2254 = vst [vmem:[#allocation7 + $0x98] sm:$0xff] %v2123
    %2255 = vst [vmem:[#allocation7 + $0xa0] sm:$0xff] %v2126
    %2256 = vst [vmem:[#allocation7 + $0xa8] sm:$0xff] %v2128
    %2257 = vst [vmem:[#allocation7 + $0xb0] sm:$0xff] %v2131
    %2258 = vst [vmem:[#allocation7 + $0xb8] sm:$0xff] %v2133
    %2259 = vst [vmem:[#allocation7 + $0xc0] sm:$0xff] %v2136
    %2260 = vst [vmem:[#allocation7 + $0xc8] sm:$0xff] %v2138
    %2261 = vst [vmem:[#allocation7 + $0xd0] sm:$0xff] %v2141
    %2262 = vst [vmem:[#allocation7 + $0xd8] sm:$0xff] %v2143
    %2263 = vst [vmem:[#allocation7 + $0xe0] sm:$0xff] %v2146
    %2264 = vst [vmem:[#allocation7 + $0xe8] sm:$0xff] %v2148
    %2265 = vst [vmem:[#allocation7 + $0xf0] sm:$0xff] %v2151
    %2266 = vst [vmem:[#allocation7 + $0xf8] sm:$0xff] %v2153
    %2267 = vst [vmem:[#allocation7 + $0x100] sm:$0xff] %v2156
    %2268 = vst [vmem:[#allocation7 + $0x108] sm:$0xff] %v2158
    %2269 = vst [vmem:[#allocation7 + $0x110] sm:$0xff] %v2161
    %2270 = vst [vmem:[#allocation7 + $0x118] sm:$0xff] %v2163
    %2271 = vst [vmem:[#allocation7 + $0x120] sm:$0xff] %v2166
    %2272 = vst [vmem:[#allocation7 + $0x128] sm:$0xff] %v2168
    %2273 = vst [vmem:[#allocation7 + $0x130] sm:$0xff] %v2171
    %2274 = vst [vmem:[#allocation7 + $0x138] sm:$0xff] %v2173
    %2275 = vst [vmem:[#allocation7 + $0x140] sm:$0xff] %v2176
    %2276 = vst [vmem:[#allocation7 + $0x148] sm:$0xff] %v2178
    %2277 = vst [vmem:[#allocation7 + $0x150] sm:$0xff] %v2181
    %2278 = vst [vmem:[#allocation7 + $0x158] sm:$0xff] %v2183
    %2279 = vst [vmem:[#allocation7 + $0x160] sm:$0xff] %v2186
    %2280 = vst [vmem:[#allocation7 + $0x168] sm:$0xff] %v2188
    %2281 = vst [vmem:[#allocation7 + $0x170] sm:$0xff] %v2191
    %2282 = vst [vmem:[#allocation7 + $0x178] sm:$0xff] %v2193
    %2283 = vst [vmem:[#allocation7 + $0x180] sm:$0xff] %v2196
    %2284 = vst [vmem:[#allocation7 + $0x188] sm:$0xff] %v2198
    %2285 = vst [vmem:[#allocation7 + $0x190] sm:$0xff] %v2201
    %2286 = vst [vmem:[#allocation7 + $0x198] sm:$0xff] %v2203
    %2287 = vst [vmem:[#allocation7 + $0x1a0] sm:$0xff] %v2206
    %2288 = vst [vmem:[#allocation7 + $0x1a8] sm:$0xff] %v2208
    %2289 = vst [vmem:[#allocation7 + $0x1b0] sm:$0xff] %v2211
    %2290 = vst [vmem:[#allocation7 + $0x1b8] sm:$0xff] %v2213
    %2291 = vst [vmem:[#allocation7 + $0x1c0] sm:$0xff] %v2216
    %2292 = vst [vmem:[#allocation7 + $0x1c8] sm:$0xff] %v2218
    %2293 = vst [vmem:[#allocation7 + $0x1d0] sm:$0xff] %v2221
    %2294 = vst [vmem:[#allocation7 + $0x1d8] sm:$0xff] %v2223
    %2295 = vst [vmem:[#allocation7 + $0x1e0] sm:$0xff] %v2226
    %2296 = vst [vmem:[#allocation7 + $0x1e8] sm:$0xff] %v2228
    %2297 = vst [vmem:[#allocation7 + $0x1f0] sm:$0xff] %v2231
    %2298 = vst [vmem:[#allocation7 + $0x1f8] sm:$0xff] %v2233
    // Predicated region
    $region54: #{tpu_custom_call.1} parent=1 // pred_check
      _
    $region55: #{tpu_custom_call.1} parent=1 // pred_check_branch
      %2300 = sbr.rel (0) target = $region57
    $region56: #{tpu_custom_call.1} parent=1 // pred_region
      %2302 = vsyncadd [#allocation4], 0
      %s2303 = sshll.u32 [#allocation7], 4
      %s2304 = int_to_ptr.vmem [resolvable:$true] %s2303
      %s2305 = sshll.u32 %s11, 4
      %s2306 = int_to_ptr.hbm [resolvable:$true] %s2305
      %2311 = dma.vmem_to_hbm [thread:$0]  %s2304, 8192, %s2306, [#allocation4], 128, 128, 8
    $region57: #{tpu_custom_call.1} parent=1 // pred_fallthru
      _
    // Predicated region
    $region58: #{tpu_custom_call.1} parent=1 // pred_check
      _
    $region59: #{tpu_custom_call.1} parent=1 // pred_check_branch
      %2313 = sbr.rel (0) target = $region61
    $region60: #{tpu_custom_call.1} parent=1 // pred_region
      %2315 = dma.done [#allocation4], 8192
    $region61: #{tpu_custom_call.1} parent=1 // pred_fallthru
      _
    %2316 = vsyncpa [#allocation3], 1
    %2317 = vsyncpa [#allocation6], 1
    %2318 = vsyncpa [#allocation4], 1

</llo_original>
